<compile_context>
chip_gen: v6e
topology: v6e:2x2x1
jax: 0.10.0
libtpu: 0.0.40
codegen_flags: <defaults>
</compile_context>

<pallas_src>
import jax
import jax.numpy as jnp
from jax.experimental import pallas as pl
from jax.experimental.pallas import tpu as pltpu


def _round_up(x, m):
    return ((x + m - 1) // m) * m


def _pair_classifier_kernel(
    s1_ref, s2_ref, m1_ref, m2_ref,          # streamed activation / mask tiles
    w1_ref, b1_ref, w2_ref, b2_ref,          # VMEM-resident classifier params
    out_ref,                                 # (block_b, C) logits
    sum1_ref, sum2_ref, cnt1_ref, cnt2_ref,  # VMEM accumulators
):
    t = pl.program_id(1)

    @pl.when(t == 0)
    def _init():
        sum1_ref[...] = jnp.zeros_like(sum1_ref)
        sum2_ref[...] = jnp.zeros_like(sum2_ref)
        cnt1_ref[...] = jnp.zeros_like(cnt1_ref)
        cnt2_ref[...] = jnp.zeros_like(cnt2_ref)

    # Upcast the (possibly bf16) streamed activations to f32 before the mask
    # multiply; accumulate in f32.
    s1 = s1_ref[...].astype(jnp.float32)     # (bB, bT, D)
    s2 = s2_ref[...].astype(jnp.float32)
    m1 = m1_ref[...]                         # (bB, bT, 1) -> lane splat vs D
    m2 = m2_ref[...]

    sum1_ref[...] += jnp.sum(s1 * m1, axis=1)          # (bB, D)
    sum2_ref[...] += jnp.sum(s2 * m2, axis=1)
    cnt1_ref[...] += jnp.sum(m1, axis=1)               # (bB, 1)
    cnt2_ref[...] += jnp.sum(m2, axis=1)

    @pl.when(t == pl.num_programs(1) - 1)
    def _epilogue():
        # masked mean; reciprocal goes to the (otherwise idle) EUP slot
        inv1 = pl.reciprocal(jnp.maximum(cnt1_ref[...], 1e-9), approx=True)
        inv2 = pl.reciprocal(jnp.maximum(cnt2_ref[...], 1e-9), approx=True)
        e1 = sum1_ref[...] * inv1                      # (bB, D)
        e2 = sum2_ref[...] * inv2
        absdiff = jnp.abs(e1 - e2)
        prod = e1 * e2

        D = e1.shape[-1]
        if D >= 256:
            # wide hidden: 4-way K=D split (each dot already fills the MXU)
            h = (jnp.dot(e1, w1_ref[0 * D:1 * D, :], preferred_element_type=jnp.float32)
                 + jnp.dot(e2, w1_ref[1 * D:2 * D, :], preferred_element_type=jnp.float32)
                 + jnp.dot(absdiff, w1_ref[2 * D:3 * D, :], preferred_element_type=jnp.float32)
                 + jnp.dot(prod, w1_ref[3 * D:4 * D, :], preferred_element_type=jnp.float32))
        else:
            # small D: one K=4D matmul fills the MXU better than 4 shallow dots
            pair = jnp.concatenate([e1, e2, absdiff, prod], axis=1)   # (bB, 4D)
            h = jnp.dot(pair, w1_ref[...], preferred_element_type=jnp.float32)

        h = jnp.tanh(h + b1_ref[...])                                  # (bB, H)
        logits = jnp.dot(h, w2_ref[...], preferred_element_type=jnp.float32) + b2_ref[...]
        out_ref[...] = logits.astype(out_ref.dtype)


def pair_classifier(s1, s2, mask1, mask2, w1, b1, w2, b2, *,
                    block_b=8, block_t=256, stream_bf16=True):
    """PairClassifier.forward (attn=None, masked-mean pooler, MLP classifier)."""
    # PyTorch squeezes (B,T,1) masks to (B,T); here we deliberately KEEP the
    # (B,T,1) layout so the in-kernel broadcast is a cheap lane splat.
    if mask1.ndim == 2:
        mask1 = mask1[..., None]
    if mask2.ndim == 2:
        mask2 = mask2[..., None]
    mask1 = mask1.astype(jnp.float32)
    mask2 = mask2.astype(jnp.float32)

    B, T, D = s1.shape
    H = w1.shape[-1]
    C = w2.shape[-1]
    assert w1.shape[0] == 4 * D

    # bf16 transport of the big (mem-bound) activations; f32 math inside.
    stream_dtype = jnp.bfloat16 if stream_bf16 else jnp.float32
    s1 = s1.astype(stream_dtype)
    s2 = s2.astype(stream_dtype)

    # Sublane-aligned batch tiles, 8-aligned sequence tiles.
    block_b = min(block_b, _round_up(B, 8))
    block_t = min(block_t, _round_up(T, 8))
    B_pad = _round_up(B, block_b)
    T_pad = _round_up(T, block_t)

    def pad_bt(x):
        return jnp.pad(x, ((0, B_pad - B), (0, T_pad - T), (0, 0)))

    s1 = pad_bt(s1)
    s2 = pad_bt(s2)
    mask1 = pad_bt(mask1)   # zero-padded mask rows/steps contribute nothing
    mask2 = pad_bt(mask2)

    grid = (B_pad // block_b, T_pad // block_t)

    act_spec = pl.BlockSpec((block_b, block_t, D), lambda b, t: (b, t, 0))
    msk_spec = pl.BlockSpec((block_b, block_t, 1), lambda b, t: (b, t, 0))
    # Weights: constant block index -> fetched once, VMEM-resident across grid.
    w1_spec = pl.BlockSpec((4 * D, H), lambda b, t: (0, 0))
    b1_spec = pl.BlockSpec((1, H), lambda b, t: (0, 0))
    w2_spec = pl.BlockSpec((H, C), lambda b, t: (0, 0))
    b2_spec = pl.BlockSpec((1, C), lambda b, t: (0, 0))
    out_spec = pl.BlockSpec((block_b, C), lambda b, t: (b, 0))
    # TODO(synk): for very large batch, pad C up to 128 for a lane-dense store.

    # Explicit VMEM budget (double-buffered tiles + weights + scratch) with
    # headroom, capped well under v7x's 64 MiB per-TC VMEM.
    act_elt = jnp.dtype(stream_dtype).itemsize
    vmem_bytes = (
        2 * 2 * block_b * block_t * D * act_elt        # s1 + s2, 2 buffers each
        + 2 * 2 * block_b * block_t * 1 * 4            # masks
        + (4 * D * H + H + H * C + C) * 4 * 2          # resident weights
        + (2 * block_b * D + 2 * block_b) * 4          # accumulators
        + 2 * block_b * C * 4                          # output block
    )
    vmem_limit = min(max(int(vmem_bytes * 1.5) + (4 << 20), 16 << 20), 48 << 20)

    out = pl.pallas_call(
        _pair_classifier_kernel,
        out_shape=jax.ShapeDtypeStruct((B_pad, C), jnp.float32),
        grid_spec=pltpu.PrefetchScalarGridSpec(
            num_scalar_prefetch=0,
            grid=grid,
            in_specs=[act_spec, act_spec, msk_spec, msk_spec,
                      w1_spec, b1_spec, w2_spec, b2_spec],
            out_specs=out_spec,
            scratch_shapes=[
                pltpu.VMEM((block_b, D), jnp.float32),   # sum1
                pltpu.VMEM((block_b, D), jnp.float32),   # sum2
                pltpu.VMEM((block_b, 1), jnp.float32),   # cnt1
                pltpu.VMEM((block_b, 1), jnp.float32),   # cnt2
            ],
        ),
        compiler_params=pltpu.CompilerParams(
            dimension_semantics=("parallel", "arbitrary"),
            vmem_limit_bytes=vmem_limit,
        ),
    )(s1, s2, mask1, mask2, w1, b1, w2, b2)

    return out[:B]


if __name__ == "__main__":
    # Small shapes consistent with the module: batch=2, seq=24, hidden=32,
    # classifier hidden=32, num classes=3. block_t=8 so the toy run still
    # exercises multiple sequence grid steps (accumulator init/epilogue).
    B, T, D, H, C = 2, 24, 32, 32, 3

    key = jax.random.PRNGKey(0)
    k_s1, k_s2, k_w1, k_b1, k_w2, k_b2 = jax.random.split(key, 6)

    s1 = jax.random.normal(k_s1, (B, T, D), dtype=jnp.float32)
    s2 = jax.random.normal(k_s2, (B, T, D), dtype=jnp.float32)

    # masks: (B, T, 1) float, valid prefix lengths per example
    len1 = jnp.array([24, 13], dtype=jnp.int32)
    len2 = jnp.array([17, 24], dtype=jnp.int32)
    pos = jnp.arange(T)[None, :]
    mask1 = (pos < len1[:, None]).astype(jnp.float32)[..., None]   # (B, T, 1)
    mask2 = (pos < len2[:, None]).astype(jnp.float32)[..., None]   # (B, T, 1)

    # classifier params (deterministic, synthetic)
    w1 = 0.05 * jax.random.normal(k_w1, (4 * D, H), dtype=jnp.float32)
    b1 = 0.05 * jax.random.normal(k_b1, (1, H), dtype=jnp.float32)
    w2 = 0.05 * jax.random.normal(k_w2, (H, C), dtype=jnp.float32)
    b2 = 0.05 * jax.random.normal(k_b2, (1, C), dtype=jnp.float32)

    logits = pair_classifier(s1, s2, mask1, mask2, w1, b1, w2, b2,
                             block_b=8, block_t=8, stream_bf16=True)
    jax.block_until_ready(logits)

    # pure-JAX reference (same bf16 transport of activations, f32 math)
    s1_r = s1.astype(jnp.bfloat16).astype(jnp.float32)
    s2_r = s2.astype(jnp.bfloat16).astype(jnp.float32)
    m1 = jnp.squeeze(mask1, -1)
    m2 = jnp.squeeze(mask2, -1)
    e1 = jnp.sum(s1_r * m1[:, :, None], 1) / jnp.maximum(jnp.sum(m1, 1, keepdims=True), 1e-9)
    e2 = jnp.sum(s2_r * m2[:, :, None], 1) / jnp.maximum(jnp.sum(m2, 1, keepdims=True), 1e-9)
    pair = jnp.concatenate([e1, e2, jnp.abs(e1 - e2), e1 * e2], axis=1)
    ref = jnp.tanh(pair @ w1 + b1) @ w2 + b2

    assert logits.shape == (B, C)
    assert jnp.allclose(logits, ref, atol=2e-3, rtol=2e-3), (
        float(jnp.max(jnp.abs(logits - ref))))
    print("KERNEL_OK")
</pallas_src>

<mosaic_0001>
module attributes {stable_mosaic.version = 11 : i64} {
  func.func @_pair_classifier_kernel(%arg0: i32, %arg1: i32, %arg2: memref<8x8x32xbf16, #tpu.memory_space<vmem>>, %arg3: memref<8x8x32xbf16, #tpu.memory_space<vmem>>, %arg4: memref<8x8x1xf32, #tpu.memory_space<vmem>>, %arg5: memref<8x8x1xf32, #tpu.memory_space<vmem>>, %arg6: memref<128x32xf32, #tpu.memory_space<vmem>>, %arg7: memref<1x32xf32, #tpu.memory_space<vmem>>, %arg8: memref<32x3xf32, #tpu.memory_space<vmem>>, %arg9: memref<1x3xf32, #tpu.memory_space<vmem>>, %arg10: memref<8x3xf32, #tpu.memory_space<vmem>>, %arg11: memref<8x32xf32, #tpu.memory_space<vmem>>, %arg12: memref<8x32xf32, #tpu.memory_space<vmem>>, %arg13: memref<8x1xf32, #tpu.memory_space<vmem>>, %arg14: memref<8x1xf32, #tpu.memory_space<vmem>>) attributes {dimension_semantics = [#tpu.dimension_semantics<parallel>, #tpu.dimension_semantics<arbitrary>], iteration_bounds = array<i64: 1, 3>, scalar_prefetch = 0 : i64, scratch_operands = 4 : i64, tpu.core_type = #tpu.core_type<tc>, window_params = [{transform_indices = @transform_0, window_bounds = array<i64: 8, 8, 32>}, {transform_indices = @transform_1, window_bounds = array<i64: 8, 8, 32>}, {transform_indices = @transform_2, window_bounds = array<i64: 8, 8, 1>}, {transform_indices = @transform_3, window_bounds = array<i64: 8, 8, 1>}, {pipeline_mode = #tpu.pipeline_mode<synchronous>, transform_indices = @transform_4, window_bounds = array<i64: 128, 32>}, {pipeline_mode = #tpu.pipeline_mode<synchronous>, transform_indices = @transform_5, window_bounds = array<i64: 1, 32>}, {pipeline_mode = #tpu.pipeline_mode<synchronous>, transform_indices = @transform_6, window_bounds = array<i64: 32, 3>}, {pipeline_mode = #tpu.pipeline_mode<synchronous>, transform_indices = @transform_7, window_bounds = array<i64: 1, 3>}, {transform_indices = @transform_8, window_bounds = array<i64: 8, 3>}]} {
    %c0_i32 = arith.constant 0 : i32
    %0 = arith.cmpi eq, %arg1, %c0_i32 : i32
    %1 = arith.extui %0 : i1 to i32
    %c0_i32_0 = arith.constant 0 : i32
    %2 = arith.cmpi ne, %1, %c0_i32_0 : i32
    scf.if %2 {
      %cst_32 = arith.constant 0.000000e+00 : f32
      %32 = vector.broadcast %cst_32 : f32 to vector<8x32xf32>
      %c0_33 = arith.constant 0 : index
      %c0_34 = arith.constant 0 : index
      %33 = vector.load %arg11[%c0_33, %c0_34] : memref<8x32xf32, #tpu.memory_space<vmem>>, vector<8x32xf32>
      tpu.vector_store %arg11[%c0_33, %c0_34], %32 {strides = array<i32>} : memref<8x32xf32, #tpu.memory_space<vmem>>, vector<8x32xf32>,
      %cst_35 = arith.constant 0.000000e+00 : f32
      %34 = vector.broadcast %cst_35 : f32 to vector<8x32xf32>
      %c0_36 = arith.constant 0 : index
      %c0_37 = arith.constant 0 : index
      %35 = vector.load %arg12[%c0_36, %c0_37] : memref<8x32xf32, #tpu.memory_space<vmem>>, vector<8x32xf32>
      tpu.vector_store %arg12[%c0_36, %c0_37], %34 {strides = array<i32>} : memref<8x32xf32, #tpu.memory_space<vmem>>, vector<8x32xf32>,
      %cst_38 = arith.constant 0.000000e+00 : f32
      %36 = vector.broadcast %cst_38 : f32 to vector<8x1xf32>
      %c0_39 = arith.constant 0 : index
      %c0_40 = arith.constant 0 : index
      %37 = vector.load %arg13[%c0_39, %c0_40] : memref<8x1xf32, #tpu.memory_space<vmem>>, vector<8x1xf32>
      tpu.vector_store %arg13[%c0_39, %c0_40], %36 {strides = array<i32>} : memref<8x1xf32, #tpu.memory_space<vmem>>, vector<8x1xf32>,
      %cst_41 = arith.constant 0.000000e+00 : f32
      %38 = vector.broadcast %cst_41 : f32 to vector<8x1xf32>
      %c0_42 = arith.constant 0 : index
      %c0_43 = arith.constant 0 : index
      %39 = vector.load %arg14[%c0_42, %c0_43] : memref<8x1xf32, #tpu.memory_space<vmem>>, vector<8x1xf32>
      tpu.vector_store %arg14[%c0_42, %c0_43], %38 {strides = array<i32>} : memref<8x1xf32, #tpu.memory_space<vmem>>, vector<8x1xf32>,
    } else {
    }
    %c0 = arith.constant 0 : index
    %c0_1 = arith.constant 0 : index
    %c0_2 = arith.constant 0 : index
    %3 = vector.load %arg2[%c0, %c0_1, %c0_2] : memref<8x8x32xbf16, #tpu.memory_space<vmem>>, vector<8x8x32xbf16>
    %4 = arith.extf %3 : vector<8x8x32xbf16> to vector<8x8x32xf32>
    %c0_3 = arith.constant 0 : index
    %c0_4 = arith.constant 0 : index
    %c0_5 = arith.constant 0 : index
    %5 = vector.load %arg3[%c0_3, %c0_4, %c0_5] : memref<8x8x32xbf16, #tpu.memory_space<vmem>>, vector<8x8x32xbf16>
    %6 = arith.extf %5 : vector<8x8x32xbf16> to vector<8x8x32xf32>
    %c0_6 = arith.constant 0 : index
    %c0_7 = arith.constant 0 : index
    %c0_8 = arith.constant 0 : index
    %7 = vector.load %arg4[%c0_6, %c0_7, %c0_8] : memref<8x8x1xf32, #tpu.memory_space<vmem>>, vector<8x8x1xf32>
    %c0_9 = arith.constant 0 : index
    %c0_10 = arith.constant 0 : index
    %c0_11 = arith.constant 0 : index
    %8 = vector.load %arg5[%c0_9, %c0_10, %c0_11] : memref<8x8x1xf32, #tpu.memory_space<vmem>>, vector<8x8x1xf32>
    %c0_12 = arith.constant 0 : index
    %c0_13 = arith.constant 0 : index
    %9 = vector.load %arg11[%c0_12, %c0_13] : memref<8x32xf32, #tpu.memory_space<vmem>>, vector<8x32xf32>
    %10 = vector.broadcast %7 : vector<8x8x1xf32> to vector<8x8x32xf32>
    %11 = arith.mulf %4, %10 : vector<8x8x32xf32>
    %cst = arith.constant dense<0.000000e+00> : vector<8x32xf32>
    %12 = vector.multi_reduction <add>, %11, %cst [1] : vector<8x8x32xf32> to vector<8x32xf32>
    %13 = arith.addf %9, %12 : vector<8x32xf32>
    %c0_14 = arith.constant 0 : index
    %c0_15 = arith.constant 0 : index
    %14 = vector.load %arg11[%c0_14, %c0_15] : memref<8x32xf32, #tpu.memory_space<vmem>>, vector<8x32xf32>
    tpu.vector_store %arg11[%c0_14, %c0_15], %13 {strides = array<i32>} : memref<8x32xf32, #tpu.memory_space<vmem>>, vector<8x32xf32>,
    %c0_16 = arith.constant 0 : index
    %c0_17 = arith.constant 0 : index
    %15 = vector.load %arg12[%c0_16, %c0_17] : memref<8x32xf32, #tpu.memory_space<vmem>>, vector<8x32xf32>
    %16 = vector.broadcast %8 : vector<8x8x1xf32> to vector<8x8x32xf32>
    %17 = arith.mulf %6, %16 : vector<8x8x32xf32>
    %cst_18 = arith.constant dense<0.000000e+00> : vector<8x32xf32>
    %18 = vector.multi_reduction <add>, %17, %cst_18 [1] : vector<8x8x32xf32> to vector<8x32xf32>
    %19 = arith.addf %15, %18 : vector<8x32xf32>
    %c0_19 = arith.constant 0 : index
    %c0_20 = arith.constant 0 : index
    %20 = vector.load %arg12[%c0_19, %c0_20] : memref<8x32xf32, #tpu.memory_space<vmem>>, vector<8x32xf32>
    tpu.vector_store %arg12[%c0_19, %c0_20], %19 {strides = array<i32>} : memref<8x32xf32, #tpu.memory_space<vmem>>, vector<8x32xf32>,
    %c0_21 = arith.constant 0 : index
    %c0_22 = arith.constant 0 : index
    %21 = vector.load %arg13[%c0_21, %c0_22] : memref<8x1xf32, #tpu.memory_space<vmem>>, vector<8x1xf32>
    %cst_23 = arith.constant dense<0.000000e+00> : vector<8x1xf32>
    %22 = vector.multi_reduction <add>, %7, %cst_23 [1] : vector<8x8x1xf32> to vector<8x1xf32>
    %23 = arith.addf %21, %22 : vector<8x1xf32>
    %c0_24 = arith.constant 0 : index
    %c0_25 = arith.constant 0 : index
    %24 = vector.load %arg13[%c0_24, %c0_25] : memref<8x1xf32, #tpu.memory_space<vmem>>, vector<8x1xf32>
    tpu.vector_store %arg13[%c0_24, %c0_25], %23 {strides = array<i32>} : memref<8x1xf32, #tpu.memory_space<vmem>>, vector<8x1xf32>,
    %c0_26 = arith.constant 0 : index
    %c0_27 = arith.constant 0 : index
    %25 = vector.load %arg14[%c0_26, %c0_27] : memref<8x1xf32, #tpu.memory_space<vmem>>, vector<8x1xf32>
    %cst_28 = arith.constant dense<0.000000e+00> : vector<8x1xf32>
    %26 = vector.multi_reduction <add>, %8, %cst_28 [1] : vector<8x8x1xf32> to vector<8x1xf32>
    %27 = arith.addf %25, %26 : vector<8x1xf32>
    %c0_29 = arith.constant 0 : index
    %c0_30 = arith.constant 0 : index
    %28 = vector.load %arg14[%c0_29, %c0_30] : memref<8x1xf32, #tpu.memory_space<vmem>>, vector<8x1xf32>
    tpu.vector_store %arg14[%c0_29, %c0_30], %27 {strides = array<i32>} : memref<8x1xf32, #tpu.memory_space<vmem>>, vector<8x1xf32>,
    %c2_i32 = arith.constant 2 : i32
    %29 = arith.cmpi eq, %arg1, %c2_i32 : i32
    %30 = arith.extui %29 : i1 to i32
    %c0_i32_31 = arith.constant 0 : i32
    %31 = arith.cmpi ne, %30, %c0_i32_31 : i32
    scf.if %31 {
      %c0_32 = arith.constant 0 : index
      %c0_33 = arith.constant 0 : index
      %32 = vector.load %arg13[%c0_32, %c0_33] : memref<8x1xf32, #tpu.memory_space<vmem>>, vector<8x1xf32>
      %cst_34 = arith.constant 9.99999971E-10 : f32
      %33 = vector.broadcast %cst_34 : f32 to vector<8x1xf32>
      %34 = arith.maximumf %32, %33 : vector<8x1xf32>
      %35 = tpu.reciprocal %34 {approx = true} : vector<8x1xf32> -> vector<8x1xf32>
      %c0_35 = arith.constant 0 : index
      %c0_36 = arith.constant 0 : index
      %36 = vector.load %arg14[%c0_35, %c0_36] : memref<8x1xf32, #tpu.memory_space<vmem>>, vector<8x1xf32>
      %cst_37 = arith.constant 9.99999971E-10 : f32
      %37 = vector.broadcast %cst_37 : f32 to vector<8x1xf32>
      %38 = arith.maximumf %36, %37 : vector<8x1xf32>
      %39 = tpu.reciprocal %38 {approx = true} : vector<8x1xf32> -> vector<8x1xf32>
      %c0_38 = arith.constant 0 : index
      %c0_39 = arith.constant 0 : index
      %40 = vector.load %arg11[%c0_38, %c0_39] : memref<8x32xf32, #tpu.memory_space<vmem>>, vector<8x32xf32>
      %41 = vector.broadcast %35 : vector<8x1xf32> to vector<8x32xf32>
      %42 = arith.mulf %40, %41 : vector<8x32xf32>
      %c0_40 = arith.constant 0 : index
      %c0_41 = arith.constant 0 : index
      %43 = vector.load %arg12[%c0_40, %c0_41] : memref<8x32xf32, #tpu.memory_space<vmem>>, vector<8x32xf32>
      %44 = vector.broadcast %39 : vector<8x1xf32> to vector<8x32xf32>
      %45 = arith.mulf %43, %44 : vector<8x32xf32>
      %46 = arith.subf %42, %45 : vector<8x32xf32>
      %47 = math.absf %46 : vector<8x32xf32>
      %48 = arith.mulf %42, %45 : vector<8x32xf32>
      %49 = tpu.concatenate %42, %45, %47, %48 in 1 : vector<8x32xf32>, vector<8x32xf32>, vector<8x32xf32>, vector<8x32xf32> -> vector<8x128xf32>
      %c0_42 = arith.constant 0 : index
      %c0_43 = arith.constant 0 : index
      %50 = vector.load %arg6[%c0_42, %c0_43] : memref<128x32xf32, #tpu.memory_space<vmem>>, vector<128x32xf32>
      %cst_44 = arith.constant dense<0.000000e+00> : vector<8x32xf32>
      %51 = tpu.matmul %49, %50, %cst_44 {dimension_numbers = #tpu.dot_dimension_numbers<[1], [0], [0], [1], [0, 0, 1, 1], [], []>} : vector<8x128xf32>, vector<128x32xf32>, vector<8x32xf32> -> vector<8x32xf32>
      %c0_45 = arith.constant 0 : index
      %c0_46 = arith.constant 0 : index
      %52 = vector.load %arg7[%c0_45, %c0_46] : memref<1x32xf32, #tpu.memory_space<vmem>>, vector<1x32xf32>
      %53 = vector.broadcast %52 : vector<1x32xf32> to vector<8x32xf32>
      %54 = arith.addf %51, %53 : vector<8x32xf32>
      %55 = math.tanh %54 : vector<8x32xf32>
      %c0_47 = arith.constant 0 : index
      %c0_48 = arith.constant 0 : index
      %56 = vector.load %arg8[%c0_47, %c0_48] : memref<32x3xf32, #tpu.memory_space<vmem>>, vector<32x3xf32>
      %cst_49 = arith.constant dense<0.000000e+00> : vector<8x3xf32>
      %57 = tpu.matmul %55, %56, %cst_49 {dimension_numbers = #tpu.dot_dimension_numbers<[1], [0], [0], [1], [0, 0, 1, 1], [], []>} : vector<8x32xf32>, vector<32x3xf32>, vector<8x3xf32> -> vector<8x3xf32>
      %c0_50 = arith.constant 0 : index
      %c0_51 = arith.constant 0 : index
      %58 = vector.load %arg9[%c0_50, %c0_51] : memref<1x3xf32, #tpu.memory_space<vmem>>, vector<1x3xf32>
      %59 = vector.broadcast %58 : vector<1x3xf32> to vector<8x3xf32>
      %60 = arith.addf %57, %59 : vector<8x3xf32>
      %c0_52 = arith.constant 0 : index
      %c0_53 = arith.constant 0 : index
      %61 = vector.load %arg10[%c0_52, %c0_53] : memref<8x3xf32, #tpu.memory_space<vmem>>, vector<8x3xf32>
      tpu.vector_store %arg10[%c0_52, %c0_53], %60 {strides = array<i32>} : memref<8x3xf32, #tpu.memory_space<vmem>>, vector<8x3xf32>,
    } else {
    }
    return
  }
  func.func @transform_0(%arg0: i32, %arg1: i32) -> (i32, i32, i32) {
    %c0_i32 = arith.constant 0 : i32
    %c0_i32_0 = arith.constant 0 : i32
    return %arg0, %arg1, %c0_i32 : i32, i32, i32
  }
  func.func @transform_1(%arg0: i32, %arg1: i32) -> (i32, i32, i32) {
    %c0_i32 = arith.constant 0 : i32
    %c0_i32_0 = arith.constant 0 : i32
    return %arg0, %arg1, %c0_i32 : i32, i32, i32
  }
  func.func @transform_2(%arg0: i32, %arg1: i32) -> (i32, i32, i32) {
    %c0_i32 = arith.constant 0 : i32
    %c0_i32_0 = arith.constant 0 : i32
    return %arg0, %arg1, %c0_i32 : i32, i32, i32
  }
  func.func @transform_3(%arg0: i32, %arg1: i32) -> (i32, i32, i32) {
    %c0_i32 = arith.constant 0 : i32
    %c0_i32_0 = arith.constant 0 : i32
    return %arg0, %arg1, %c0_i32 : i32, i32, i32
  }
  func.func @transform_4(%arg0: i32, %arg1: i32) -> (i32, i32) {
    %c0_i32 = arith.constant 0 : i32
    %c0_i32_0 = arith.constant 0 : i32
    %c0_i32_1 = arith.constant 0 : i32
    return %c0_i32, %c0_i32_0 : i32, i32
  }
  func.func @transform_5(%arg0: i32, %arg1: i32) -> (i32, i32) {
    %c0_i32 = arith.constant 0 : i32
    %c0_i32_0 = arith.constant 0 : i32
    %c0_i32_1 = arith.constant 0 : i32
    return %c0_i32, %c0_i32_0 : i32, i32
  }
  func.func @transform_6(%arg0: i32, %arg1: i32) -> (i32, i32) {
    %c0_i32 = arith.constant 0 : i32
    %c0_i32_0 = arith.constant 0 : i32
    %c0_i32_1 = arith.constant 0 : i32
    return %c0_i32, %c0_i32_0 : i32, i32
  }
  func.func @transform_7(%arg0: i32, %arg1: i32) -> (i32, i32) {
    %c0_i32 = arith.constant 0 : i32
    %c0_i32_0 = arith.constant 0 : i32
    %c0_i32_1 = arith.constant 0 : i32
    return %c0_i32, %c0_i32_0 : i32, i32
  }
  func.func @transform_8(%arg0: i32, %arg1: i32) -> (i32, i32) {
    %c0_i32 = arith.constant 0 : i32
    %c0_i32_0 = arith.constant 0 : i32
    return %arg0, %c0_i32 : i32, i32
  }
}

</mosaic_0001>

<llo_original>
// kernel: tpu_custom_call.1
$region0: #{tpu_custom_call.1}
  #allocation0 [shape = 'u32[]', space=smem, size = 0x4, offset = 0x4, fixed_abs, tag = 'smem constant byte address 0x4 - core index']
  #allocation1 [shape = 'u32[144,128]{1,0:T(1,128)}', space=vmem, size = 0x12000, scoped, tag = 'internal scratch']
  #allocation2 [shape = 'f32[8,32]{1,0:T(8,128)}', space=vmem, size = 0x1000, scoped, tag = 'scratch operand']
  #allocation3 [shape = 'f32[8,32]{1,0:T(8,128)}', space=vmem, size = 0x1000, scoped, tag = 'scratch operand']
  #allocation4 [shape = 'f32[8,1]{1,0:T(8,128)}', space=vmem, size = 0x1000, scoped, tag = 'scratch operand']
  #allocation5 [shape = 'f32[8,1]{1,0:T(8,128)}', space=vmem, size = 0x1000, scoped, tag = 'scratch operand']
  %s0 = inlined_call_operand.vmem [shape: bf16[8,24,32], index: 0, kind: input, shape index: {}]
  %s1 = inlined_call_operand.vmem [shape: bf16[8,24,32], index: 1, kind: input, shape index: {}]
  %s2 = inlined_call_operand.vmem [shape: f32[8,24,1], index: 2, kind: input, shape index: {}]
  %s3 = inlined_call_operand.vmem [shape: f32[8,24,1], index: 3, kind: input, shape index: {}]
  %s4 = inlined_call_operand.vmem [shape: f32[128,32], index: 4, kind: input, shape index: {}]
  %s5 = inlined_call_operand.vmem [shape: f32[1,32], index: 5, kind: input, shape index: {}]
  %s6 = inlined_call_operand.vmem [shape: f32[32,3], index: 6, kind: input, shape index: {}]
  %s7 = inlined_call_operand.vmem [shape: f32[1,3], index: 7, kind: input, shape index: {}]
  %s8 = inlined_call_operand.vmem [shape: f32[8,3], index: 8, kind: output, shape index: {}]
  %s9 = sld [smem:[#allocation0]]
  $region231: #{tpu_custom_call.1} parent=0
    _
  %s11 = ssub.s32 1, %s9
  %s12 = scalar_select 0, %s11, %s9
  $region1: #{tpu_custom_call.1} parent=0
    #allocation6 [shape = 'u8[32768]{0}', space=vmem, size = 0x8000, scoped, tag = 'input window, operand 0']
    #allocation7 [shape = 'u8[32768]{0}', space=vmem, size = 0x8000, scoped, tag = 'input window, operand 1']
    #allocation8 [shape = 'u8[65536]{0}', space=vmem, size = 0x10000, scoped, tag = 'input window, operand 2']
    #allocation9 [shape = 'u8[65536]{0}', space=vmem, size = 0x10000, scoped, tag = 'input window, operand 3']
    loop: start=0, step=1, limit=5
    $region2: #{tpu_custom_call.1} parent=1 // loop_pre_header
      _
    $region3: #{tpu_custom_call.1} parent=1 // loop_header
      %s14 = sphi 0, %s18
      %p15 = scmp.ge.s32.totalorder %s14, 5
      %s21 = sphi 0, %s33
      %s22 = sphi 0, %s29
      %s23 = sphi 0, %s21
      %s24 = sphi 0, %s22
      %s25 = sphi 0, %s23
      %s26 = sphi 0, %s24
      %s38 = sphi 0, %s40
      %s41 = sphi 0, %s38
      %s42 = sphi 0, %s41
      %s58 = sphi 0, %s42
      %s66 = sphi 0, %s68
      %s69 = sphi 0, %s66
      %s70 = sphi 0, %s69
      %s86 = sphi 0, %s70
      %s94 = sphi 0, %s96
      %s97 = sphi 0, %s94
      %s98 = sphi 0, %s97
      %s114 = sphi 0, %s98
      %s122 = sphi 0, %s124
      %s125 = sphi 0, %s122
      %s126 = sphi 0, %s125
      %s142 = sphi 0, %s126
      %s146 = sphi 0, %s146
      %s148 = sphi 0, %s146
      %s149 = sphi 0, %s148
      %s163 = sphi 0, %s149
      %s167 = sphi 0, %s167
      %s169 = sphi 0, %s167
      %s170 = sphi 0, %s169
      %s184 = sphi 0, %s170
      %s188 = sphi 0, %s188
      %s190 = sphi 0, %s188
      %s191 = sphi 0, %s190
      %s205 = sphi 0, %s191
      %s209 = sphi 0, %s209
      %s211 = sphi 0, %s209
      %s212 = sphi 0, %s211
      %s226 = sphi 0, %s212
      %s232 = sphi 0, %s234
      %s235 = sphi 0, %s232
      %s236 = sphi 0, %s235
      %s252 = sphi 0, %s236
    $region4: #{tpu_custom_call.1} parent=1 // loop_header_branch
      %17 = sbr.rel (%p15) target = $region8
    $region5: #{tpu_custom_call.1} parent=1 // loop_body
      %s19 = ssub.s32 %s14, 1
      %s20 = ssub.s32 %s14, 2
      %s27 = sadd.s32 1, %s22
      %p28 = scmp.ge.s32.totalorder %s27, 3
      %s29 = scalar_select %p28, 0, %s27
      %s30 = sadd.s32 1, %s21
      %s31 = scalar_select %p28, %s30, %s21
      %p32 = scmp.ge.s32.totalorder %s31, 1
      %s33 = scalar_select %p32, 0, %s31
      %s34 = ssub.s32 %s21, %s33
      %s35 = ssub.s32 %s22, %s29
      %s36 = sor.u32 %s34, %s35
      %p37 = scmp.eq.s32.totalorder %s36, 0
      %s39 = sadd.s32 %s38, 1
      %s40 = scalar_select %p37, %s38, %s39
      %p43 = pneg %p37
      %p44 = scmp.eq.s32.totalorder %s14, 2
      %p45 = por %p43, %p44
      %p46 = scmp.ne.s32.totalorder %s38, %s41
      %p47 = scmp.eq.s32.totalorder %s14, 0
      %p48 = por %p46, %p47
      %p49 = scmp.ne.s32.totalorder %s38, %s41
      %p50 = scmp.eq.s32.totalorder %s19, 2
      %p51 = por %p49, %p50
      %p52 = scmp.ne.s32.totalorder %s41, %s42
      %p53 = scmp.eq.s32.totalorder %s19, 0
      %p54 = por %p52, %p53
      %p55 = scmp.ne.s32.totalorder %s41, %s42
      %p56 = scmp.eq.s32.totalorder %s20, 2
      %p57 = por %p55, %p56
      %p59 = scmp.ne.s32.totalorder %s42, %s58
      %p60 = scmp.eq.s32.totalorder %s20, 0
      %p61 = por %p59, %p60
      %s62 = ssub.s32 %s21, %s33
      %s63 = ssub.s32 %s22, %s29
      %s64 = sor.u32 %s62, %s63
      %p65 = scmp.eq.s32.totalorder %s64, 0
      %s67 = sadd.s32 %s66, 1
      %s68 = scalar_select %p65, %s66, %s67
      %p71 = pneg %p65
      %p72 = scmp.eq.s32.totalorder %s14, 2
      %p73 = por %p71, %p72
      %p74 = scmp.ne.s32.totalorder %s66, %s69
      %p75 = scmp.eq.s32.totalorder %s14, 0
      %p76 = por %p74, %p75
      %p77 = scmp.ne.s32.totalorder %s66, %s69
      %p78 = scmp.eq.s32.totalorder %s19, 2
      %p79 = por %p77, %p78
      %p80 = scmp.ne.s32.totalorder %s69, %s70
      %p81 = scmp.eq.s32.totalorder %s19, 0
      %p82 = por %p80, %p81
      %p83 = scmp.ne.s32.totalorder %s69, %s70
      %p84 = scmp.eq.s32.totalorder %s20, 2
      %p85 = por %p83, %p84
      %p87 = scmp.ne.s32.totalorder %s70, %s86
      %p88 = scmp.eq.s32.totalorder %s20, 0
      %p89 = por %p87, %p88
      %s90 = ssub.s32 %s21, %s33
      %s91 = ssub.s32 %s22, %s29
      %s92 = sor.u32 %s90, %s91
      %p93 = scmp.eq.s32.totalorder %s92, 0
      %s95 = sadd.s32 %s94, 1
      %s96 = scalar_select %p93, %s94, %s95
      %p99 = pneg %p93
      %p100 = scmp.eq.s32.totalorder %s14, 2
      %p101 = por %p99, %p100
      %p102 = scmp.ne.s32.totalorder %s94, %s97
      %p103 = scmp.eq.s32.totalorder %s14, 0
      %p104 = por %p102, %p103
      %p105 = scmp.ne.s32.totalorder %s94, %s97
      %p106 = scmp.eq.s32.totalorder %s19, 2
      %p107 = por %p105, %p106
      %p108 = scmp.ne.s32.totalorder %s97, %s98
      %p109 = scmp.eq.s32.totalorder %s19, 0
      %p110 = por %p108, %p109
      %p111 = scmp.ne.s32.totalorder %s97, %s98
      %p112 = scmp.eq.s32.totalorder %s20, 2
      %p113 = por %p111, %p112
      %p115 = scmp.ne.s32.totalorder %s98, %s114
      %p116 = scmp.eq.s32.totalorder %s20, 0
      %p117 = por %p115, %p116
      %s118 = ssub.s32 %s21, %s33
      %s119 = ssub.s32 %s22, %s29
      %s120 = sor.u32 %s118, %s119
      %p121 = scmp.eq.s32.totalorder %s120, 0
      %s123 = sadd.s32 %s122, 1
      %s124 = scalar_select %p121, %s122, %s123
      %p127 = pneg %p121
      %p128 = scmp.eq.s32.totalorder %s14, 2
      %p129 = por %p127, %p128
      %p130 = scmp.ne.s32.totalorder %s122, %s125
      %p131 = scmp.eq.s32.totalorder %s14, 0
      %p132 = por %p130, %p131
      %p133 = scmp.ne.s32.totalorder %s122, %s125
      %p134 = scmp.eq.s32.totalorder %s19, 2
      %p135 = por %p133, %p134
      %p136 = scmp.ne.s32.totalorder %s125, %s126
      %p137 = scmp.eq.s32.totalorder %s19, 0
      %p138 = por %p136, %p137
      %p139 = scmp.ne.s32.totalorder %s125, %s126
      %p140 = scmp.eq.s32.totalorder %s20, 2
      %p141 = por %p139, %p140
      %p143 = scmp.ne.s32.totalorder %s126, %s142
      %p144 = scmp.eq.s32.totalorder %s20, 0
      %p145 = por %p143, %p144
      %s147 = sadd.s32 %s146, 1
      %p150 = scmp.eq.s32.totalorder %s14, 2
      %p151 = scmp.ne.s32.totalorder %s146, %s148
      %p152 = scmp.eq.s32.totalorder %s14, 0
      %p153 = por %p151, %p152
      %p154 = scmp.ne.s32.totalorder %s146, %s148
      %p155 = scmp.eq.s32.totalorder %s19, 2
      %p156 = por %p154, %p155
      %p157 = scmp.ne.s32.totalorder %s148, %s149
      %p158 = scmp.eq.s32.totalorder %s19, 0
      %p159 = por %p157, %p158
      %p160 = scmp.ne.s32.totalorder %s148, %s149
      %p161 = scmp.eq.s32.totalorder %s20, 2
      %p162 = por %p160, %p161
      %p164 = scmp.ne.s32.totalorder %s149, %s163
      %p165 = scmp.eq.s32.totalorder %s20, 0
      %p166 = por %p164, %p165
      %s168 = sadd.s32 %s167, 1
      %p171 = scmp.eq.s32.totalorder %s14, 2
      %p172 = scmp.ne.s32.totalorder %s167, %s169
      %p173 = scmp.eq.s32.totalorder %s14, 0
      %p174 = por %p172, %p173
      %p175 = scmp.ne.s32.totalorder %s167, %s169
      %p176 = scmp.eq.s32.totalorder %s19, 2
      %p177 = por %p175, %p176
      %p178 = scmp.ne.s32.totalorder %s169, %s170
      %p179 = scmp.eq.s32.totalorder %s19, 0
      %p180 = por %p178, %p179
      %p181 = scmp.ne.s32.totalorder %s169, %s170
      %p182 = scmp.eq.s32.totalorder %s20, 2
      %p183 = por %p181, %p182
      %p185 = scmp.ne.s32.totalorder %s170, %s184
      %p186 = scmp.eq.s32.totalorder %s20, 0
      %p187 = por %p185, %p186
      %s189 = sadd.s32 %s188, 1
      %p192 = scmp.eq.s32.totalorder %s14, 2
      %p193 = scmp.ne.s32.totalorder %s188, %s190
      %p194 = scmp.eq.s32.totalorder %s14, 0
      %p195 = por %p193, %p194
      %p196 = scmp.ne.s32.totalorder %s188, %s190
      %p197 = scmp.eq.s32.totalorder %s19, 2
      %p198 = por %p196, %p197
      %p199 = scmp.ne.s32.totalorder %s190, %s191
      %p200 = scmp.eq.s32.totalorder %s19, 0
      %p201 = por %p199, %p200
      %p202 = scmp.ne.s32.totalorder %s190, %s191
      %p203 = scmp.eq.s32.totalorder %s20, 2
      %p204 = por %p202, %p203
      %p206 = scmp.ne.s32.totalorder %s191, %s205
      %p207 = scmp.eq.s32.totalorder %s20, 0
      %p208 = por %p206, %p207
      %s210 = sadd.s32 %s209, 1
      %p213 = scmp.eq.s32.totalorder %s14, 2
      %p214 = scmp.ne.s32.totalorder %s209, %s211
      %p215 = scmp.eq.s32.totalorder %s14, 0
      %p216 = por %p214, %p215
      %p217 = scmp.ne.s32.totalorder %s209, %s211
      %p218 = scmp.eq.s32.totalorder %s19, 2
      %p219 = por %p217, %p218
      %p220 = scmp.ne.s32.totalorder %s211, %s212
      %p221 = scmp.eq.s32.totalorder %s19, 0
      %p222 = por %p220, %p221
      %p223 = scmp.ne.s32.totalorder %s211, %s212
      %p224 = scmp.eq.s32.totalorder %s20, 2
      %p225 = por %p223, %p224
      %p227 = scmp.ne.s32.totalorder %s212, %s226
      %p228 = scmp.eq.s32.totalorder %s20, 0
      %p229 = por %p227, %p228
      %s230 = ssub.s32 %s21, %s33
      %p231 = scmp.eq.s32.totalorder %s230, 0
      %s233 = sadd.s32 %s232, 1
      %s234 = scalar_select %p231, %s232, %s233
      %p237 = pneg %p231
      %p238 = scmp.eq.s32.totalorder %s14, 2
      %p239 = por %p237, %p238
      %p240 = scmp.ne.s32.totalorder %s232, %s235
      %p241 = scmp.eq.s32.totalorder %s14, 0
      %p242 = por %p240, %p241
      %p243 = scmp.ne.s32.totalorder %s232, %s235
      %p244 = scmp.eq.s32.totalorder %s19, 2
      %p245 = por %p243, %p244
      %p246 = scmp.ne.s32.totalorder %s235, %s236
      %p247 = scmp.eq.s32.totalorder %s19, 0
      %p248 = por %p246, %p247
      %p249 = scmp.ne.s32.totalorder %s235, %s236
      %p250 = scmp.eq.s32.totalorder %s20, 2
      %p251 = por %p249, %p250
      %p253 = scmp.ne.s32.totalorder %s236, %s252
      %p254 = scmp.eq.s32.totalorder %s20, 0
      %p255 = por %p253, %p254
      %p256 = scmp.le.s32.totalorder 1, %s14
      %p257 = scmp.lt.s32.totalorder %s14, 4
      %p258 = pnand %p256, %p257
      %p259 = pneg %p258
      // Predicated region
      $region9: #{tpu_custom_call.1} parent=5 // pred_check
        _
      $region10: #{tpu_custom_call.1} parent=5 // pred_check_branch
        %261 = sbr.rel (%p258) target = $region12
      $region11: #{tpu_custom_call.1} parent=5 // pred_region
        %s262 = ssub.s32 %s14, 1
        // Predicated region
        $region13: #{tpu_custom_call.1} parent=11 // pred_check
          %p263 = pneg %p159
        $region14: #{tpu_custom_call.1} parent=11 // pred_check_branch
          %265 = sbr.rel (%p263) target = $region16
        $region15: #{tpu_custom_call.1} parent=11 // pred_region
          _
        $region16: #{tpu_custom_call.1} parent=11 // pred_fallthru
          _
        // Predicated region
        $region17: #{tpu_custom_call.1} parent=11 // pred_check
          %p266 = pneg %p180
        $region18: #{tpu_custom_call.1} parent=11 // pred_check_branch
          %268 = sbr.rel (%p266) target = $region20
        $region19: #{tpu_custom_call.1} parent=11 // pred_region
          _
        $region20: #{tpu_custom_call.1} parent=11 // pred_fallthru
          _
        // Predicated region
        $region21: #{tpu_custom_call.1} parent=11 // pred_check
          %p269 = pneg %p201
        $region22: #{tpu_custom_call.1} parent=11 // pred_check_branch
          %271 = sbr.rel (%p269) target = $region24
        $region23: #{tpu_custom_call.1} parent=11 // pred_region
          _
        $region24: #{tpu_custom_call.1} parent=11 // pred_fallthru
          _
        // Predicated region
        $region25: #{tpu_custom_call.1} parent=11 // pred_check
          %p272 = pneg %p222
        $region26: #{tpu_custom_call.1} parent=11 // pred_check_branch
          %274 = sbr.rel (%p272) target = $region28
        $region27: #{tpu_custom_call.1} parent=11 // pred_region
          _
        $region28: #{tpu_custom_call.1} parent=11 // pred_fallthru
          _
      $region12: #{tpu_custom_call.1} parent=5 // pred_fallthru
        _
      %p275 = scmp.lt.s32.totalorder %s14, 3
      // Predicated region
      $region29: #{tpu_custom_call.1} parent=5 // pred_check
        %p276 = pneg %p275
      $region30: #{tpu_custom_call.1} parent=5 // pred_check_branch
        %278 = sbr.rel (%p276) target = $region32
      $region31: #{tpu_custom_call.1} parent=5 // pred_region
        // Predicated region
        $region33: #{tpu_custom_call.1} parent=31 // pred_check
          %p279 = pneg %p48
        $region34: #{tpu_custom_call.1} parent=31 // pred_check_branch
          %281 = sbr.rel (%p279) target = $region36
        $region35: #{tpu_custom_call.1} parent=31 // pred_region
          %s282 = sand.u32 %s38, 1
          %s283 = sand.u32 %s38, 1
          %s284 = smul.addr %s283, 32
          %s285 = scalar_lea.vmem [#allocation6], %s284
          %s286 = smul.u32 8, %s21
          %s287 = smul.addr %s286, 3
          %s288 = sadd.s32 %s22, %s287
          %s289 = smul.addr %s288, 4
          %s290 = scalar_lea.vmem %s0, %s289
          // Predicated region
          $region37: #{tpu_custom_call.1} parent=35 // pred_check
            _
          $region38: #{tpu_custom_call.1} parent=35 // pred_check_branch
            %292 = sbr.rel (0) target = $region40
          $region39: #{tpu_custom_call.1} parent=35 // pred_region
            // Predicated region
            $region41: #{tpu_custom_call.1} parent=39 // pred_check
              _
            $region42: #{tpu_custom_call.1} parent=39 // pred_check_branch
              %294 = sbr.rel target = $region44
            $region43: #{tpu_custom_call.1} parent=39 // pred_region
              // Predicated region
              $region56: #{tpu_custom_call.1} parent=43 // pred_check
                _
              $region57: #{tpu_custom_call.1} parent=43 // pred_check_branch
                %324 = sbr.rel (0) target = $region59
              $region58: #{tpu_custom_call.1} parent=43 // pred_region
                loop: start=0, step=1, limit=1
                $region60: #{tpu_custom_call.1} parent=58 // loop_pre_header
                  _
                $region61: #{tpu_custom_call.1} parent=58 // loop_header
                  %s326 = sphi 0, %s330
                  %p327 = scmp.ge.s32.totalorder %s326, 1
                  %s331 = sphi %s290, %s290
                  %s332 = sphi %s285, %s285
                $region62: #{tpu_custom_call.1} parent=58 // loop_header_branch
                  %329 = sbr.rel (%p327) target = $region66
                $region63: #{tpu_custom_call.1} parent=58 // loop_body
                  _
                $region64: #{tpu_custom_call.1} parent=58 // loop_footer
                  %s330 = sadd.s32 1, %s326
                $region65: #{tpu_custom_call.1} parent=58 // loop_footer_branch
                  %325 = sbr.rel target = $region61
                $region66: #{tpu_custom_call.1} parent=58 // loop_exit
                  _
                %s334 = ssub.s32 16, 1
                loop: start=0, step=1, limit=1
                $region67: #{tpu_custom_call.1} parent=58 // loop_pre_header
                  _
                $region68: #{tpu_custom_call.1} parent=58 // loop_header
                  %s336 = sphi 0, %s340
                  %p337 = scmp.ge.s32.totalorder %s336, 1
                  %s341 = sphi %s290, %s290
                  %s342 = sphi %s285, %s285
                $region69: #{tpu_custom_call.1} parent=58 // loop_header_branch
                  %339 = sbr.rel (%p337) target = $region73
                $region70: #{tpu_custom_call.1} parent=58 // loop_body
                  %v343 = vld [vmem:[%s341] sm:%s334]
                  %344 = vst [vmem:[%s342] sm:%s334] %v343
                  %v345 = vld [vmem:[%s341 + $0xc] sm:%s334]
                  %346 = vst [vmem:[%s342 + $0x4] sm:%s334] %v345
                  %v347 = vld [vmem:[%s341 + $0x18] sm:%s334]
                  %348 = vst [vmem:[%s342 + $0x8] sm:%s334] %v347
                  %v349 = vld [vmem:[%s341 + $0x24] sm:%s334]
                  %350 = vst [vmem:[%s342 + $0xc] sm:%s334] %v349
                  %v351 = vld [vmem:[%s341 + $0x30] sm:%s334]
                  %352 = vst [vmem:[%s342 + $0x10] sm:%s334] %v351
                  %v353 = vld [vmem:[%s341 + $0x3c] sm:%s334]
                  %354 = vst [vmem:[%s342 + $0x14] sm:%s334] %v353
                  %v355 = vld [vmem:[%s341 + $0x48] sm:%s334]
                  %356 = vst [vmem:[%s342 + $0x18] sm:%s334] %v355
                  %v357 = vld [vmem:[%s341 + $0x54] sm:%s334]
                  %358 = vst [vmem:[%s342 + $0x1c] sm:%s334] %v357
                $region71: #{tpu_custom_call.1} parent=58 // loop_footer
                  %s340 = sadd.s32 1, %s336
                $region72: #{tpu_custom_call.1} parent=58 // loop_footer_branch
                  %335 = sbr.rel target = $region68
                $region73: #{tpu_custom_call.1} parent=58 // loop_exit
                  _
              $region59: #{tpu_custom_call.1} parent=43 // pred_fallthru
                _
            $region44: #{tpu_custom_call.1} parent=39 // pred_fallthru
              _
            // Predicated region
            $region45: #{tpu_custom_call.1} parent=39 // pred_check
              _
            $region46: #{tpu_custom_call.1} parent=39 // pred_check_branch
              %296 = sbr.rel (0) target = $region48
            $region47: #{tpu_custom_call.1} parent=39 // pred_region
              %s298 = ssub.s32 16, 1
              loop: start=0, step=1, limit=1
              $region49: #{tpu_custom_call.1} parent=47 // loop_pre_header
                _
              $region50: #{tpu_custom_call.1} parent=47 // loop_header
                %s300 = sphi 0, %s304
                %p301 = scmp.ge.s32.totalorder %s300, 1
                %s305 = sphi %s290, %s290
                %s306 = sphi %s285, %s285
              $region51: #{tpu_custom_call.1} parent=47 // loop_header_branch
                %303 = sbr.rel (%p301) target = $region55
              $region52: #{tpu_custom_call.1} parent=47 // loop_body
                %v307 = vld [vmem:[%s305] sm:%s298]
                %308 = vst [vmem:[%s306] sm:%s298] %v307
                %v309 = vld [vmem:[%s305 + $0xc] sm:%s298]
                %310 = vst [vmem:[%s306 + $0x4] sm:%s298] %v309
                %v311 = vld [vmem:[%s305 + $0x18] sm:%s298]
                %312 = vst [vmem:[%s306 + $0x8] sm:%s298] %v311
                %v313 = vld [vmem:[%s305 + $0x24] sm:%s298]
                %314 = vst [vmem:[%s306 + $0xc] sm:%s298] %v313
                %v315 = vld [vmem:[%s305 + $0x30] sm:%s298]
                %316 = vst [vmem:[%s306 + $0x10] sm:%s298] %v315
                %v317 = vld [vmem:[%s305 + $0x3c] sm:%s298]
                %318 = vst [vmem:[%s306 + $0x14] sm:%s298] %v317
                %v319 = vld [vmem:[%s305 + $0x48] sm:%s298]
                %320 = vst [vmem:[%s306 + $0x18] sm:%s298] %v319
                %v321 = vld [vmem:[%s305 + $0x54] sm:%s298]
                %322 = vst [vmem:[%s306 + $0x1c] sm:%s298] %v321
              $region53: #{tpu_custom_call.1} parent=47 // loop_footer
                %s304 = sadd.s32 1, %s300
              $region54: #{tpu_custom_call.1} parent=47 // loop_footer_branch
                %299 = sbr.rel target = $region50
              $region55: #{tpu_custom_call.1} parent=47 // loop_exit
                _
            $region48: #{tpu_custom_call.1} parent=39 // pred_fallthru
              _
          $region40: #{tpu_custom_call.1} parent=35 // pred_fallthru
            _
          %359 = vnop
        $region36: #{tpu_custom_call.1} parent=31 // pred_fallthru
          _
        // Predicated region
        $region74: #{tpu_custom_call.1} parent=31 // pred_check
          %p360 = pneg %p76
        $region75: #{tpu_custom_call.1} parent=31 // pred_check_branch
          %362 = sbr.rel (%p360) target = $region77
        $region76: #{tpu_custom_call.1} parent=31 // pred_region
          %s363 = sand.u32 %s66, 1
          %s364 = sand.u32 %s66, 1
          %s365 = smul.addr %s364, 32
          %s366 = scalar_lea.vmem [#allocation7], %s365
          %s367 = smul.u32 8, %s21
          %s368 = smul.addr %s367, 3
          %s369 = sadd.s32 %s22, %s368
          %s370 = smul.addr %s369, 4
          %s371 = scalar_lea.vmem %s1, %s370
          // Predicated region
          $region78: #{tpu_custom_call.1} parent=76 // pred_check
            _
          $region79: #{tpu_custom_call.1} parent=76 // pred_check_branch
            %373 = sbr.rel (0) target = $region81
          $region80: #{tpu_custom_call.1} parent=76 // pred_region
            // Predicated region
            $region82: #{tpu_custom_call.1} parent=80 // pred_check
              _
            $region83: #{tpu_custom_call.1} parent=80 // pred_check_branch
              %375 = sbr.rel target = $region85
            $region84: #{tpu_custom_call.1} parent=80 // pred_region
              // Predicated region
              $region97: #{tpu_custom_call.1} parent=84 // pred_check
                _
              $region98: #{tpu_custom_call.1} parent=84 // pred_check_branch
                %405 = sbr.rel (0) target = $region100
              $region99: #{tpu_custom_call.1} parent=84 // pred_region
                loop: start=0, step=1, limit=1
                $region101: #{tpu_custom_call.1} parent=99 // loop_pre_header
                  _
                $region102: #{tpu_custom_call.1} parent=99 // loop_header
                  %s407 = sphi 0, %s411
                  %p408 = scmp.ge.s32.totalorder %s407, 1
                  %s412 = sphi %s371, %s371
                  %s413 = sphi %s366, %s366
                $region103: #{tpu_custom_call.1} parent=99 // loop_header_branch
                  %410 = sbr.rel (%p408) target = $region107
                $region104: #{tpu_custom_call.1} parent=99 // loop_body
                  _
                $region105: #{tpu_custom_call.1} parent=99 // loop_footer
                  %s411 = sadd.s32 1, %s407
                $region106: #{tpu_custom_call.1} parent=99 // loop_footer_branch
                  %406 = sbr.rel target = $region102
                $region107: #{tpu_custom_call.1} parent=99 // loop_exit
                  _
                %s415 = ssub.s32 16, 1
                loop: start=0, step=1, limit=1
                $region108: #{tpu_custom_call.1} parent=99 // loop_pre_header
                  _
                $region109: #{tpu_custom_call.1} parent=99 // loop_header
                  %s417 = sphi 0, %s421
                  %p418 = scmp.ge.s32.totalorder %s417, 1
                  %s422 = sphi %s371, %s371
                  %s423 = sphi %s366, %s366
                $region110: #{tpu_custom_call.1} parent=99 // loop_header_branch
                  %420 = sbr.rel (%p418) target = $region114
                $region111: #{tpu_custom_call.1} parent=99 // loop_body
                  %v424 = vld [vmem:[%s422] sm:%s415]
                  %425 = vst [vmem:[%s423] sm:%s415] %v424
                  %v426 = vld [vmem:[%s422 + $0xc] sm:%s415]
                  %427 = vst [vmem:[%s423 + $0x4] sm:%s415] %v426
                  %v428 = vld [vmem:[%s422 + $0x18] sm:%s415]
                  %429 = vst [vmem:[%s423 + $0x8] sm:%s415] %v428
                  %v430 = vld [vmem:[%s422 + $0x24] sm:%s415]
                  %431 = vst [vmem:[%s423 + $0xc] sm:%s415] %v430
                  %v432 = vld [vmem:[%s422 + $0x30] sm:%s415]
                  %433 = vst [vmem:[%s423 + $0x10] sm:%s415] %v432
                  %v434 = vld [vmem:[%s422 + $0x3c] sm:%s415]
                  %435 = vst [vmem:[%s423 + $0x14] sm:%s415] %v434
                  %v436 = vld [vmem:[%s422 + $0x48] sm:%s415]
                  %437 = vst [vmem:[%s423 + $0x18] sm:%s415] %v436
                  %v438 = vld [vmem:[%s422 + $0x54] sm:%s415]
                  %439 = vst [vmem:[%s423 + $0x1c] sm:%s415] %v438
                $region112: #{tpu_custom_call.1} parent=99 // loop_footer
                  %s421 = sadd.s32 1, %s417
                $region113: #{tpu_custom_call.1} parent=99 // loop_footer_branch
                  %416 = sbr.rel target = $region109
                $region114: #{tpu_custom_call.1} parent=99 // loop_exit
                  _
              $region100: #{tpu_custom_call.1} parent=84 // pred_fallthru
                _
            $region85: #{tpu_custom_call.1} parent=80 // pred_fallthru
              _
            // Predicated region
            $region86: #{tpu_custom_call.1} parent=80 // pred_check
              _
            $region87: #{tpu_custom_call.1} parent=80 // pred_check_branch
              %377 = sbr.rel (0) target = $region89
            $region88: #{tpu_custom_call.1} parent=80 // pred_region
              %s379 = ssub.s32 16, 1
              loop: start=0, step=1, limit=1
              $region90: #{tpu_custom_call.1} parent=88 // loop_pre_header
                _
              $region91: #{tpu_custom_call.1} parent=88 // loop_header
                %s381 = sphi 0, %s385
                %p382 = scmp.ge.s32.totalorder %s381, 1
                %s386 = sphi %s371, %s371
                %s387 = sphi %s366, %s366
              $region92: #{tpu_custom_call.1} parent=88 // loop_header_branch
                %384 = sbr.rel (%p382) target = $region96
              $region93: #{tpu_custom_call.1} parent=88 // loop_body
                %v388 = vld [vmem:[%s386] sm:%s379]
                %389 = vst [vmem:[%s387] sm:%s379] %v388
                %v390 = vld [vmem:[%s386 + $0xc] sm:%s379]
                %391 = vst [vmem:[%s387 + $0x4] sm:%s379] %v390
                %v392 = vld [vmem:[%s386 + $0x18] sm:%s379]
                %393 = vst [vmem:[%s387 + $0x8] sm:%s379] %v392
                %v394 = vld [vmem:[%s386 + $0x24] sm:%s379]
                %395 = vst [vmem:[%s387 + $0xc] sm:%s379] %v394
                %v396 = vld [vmem:[%s386 + $0x30] sm:%s379]
                %397 = vst [vmem:[%s387 + $0x10] sm:%s379] %v396
                %v398 = vld [vmem:[%s386 + $0x3c] sm:%s379]
                %399 = vst [vmem:[%s387 + $0x14] sm:%s379] %v398
                %v400 = vld [vmem:[%s386 + $0x48] sm:%s379]
                %401 = vst [vmem:[%s387 + $0x18] sm:%s379] %v400
                %v402 = vld [vmem:[%s386 + $0x54] sm:%s379]
                %403 = vst [vmem:[%s387 + $0x1c] sm:%s379] %v402
              $region94: #{tpu_custom_call.1} parent=88 // loop_footer
                %s385 = sadd.s32 1, %s381
              $region95: #{tpu_custom_call.1} parent=88 // loop_footer_branch
                %380 = sbr.rel target = $region91
              $region96: #{tpu_custom_call.1} parent=88 // loop_exit
                _
            $region89: #{tpu_custom_call.1} parent=80 // pred_fallthru
              _
          $region81: #{tpu_custom_call.1} parent=76 // pred_fallthru
            _
          %440 = vnop
        $region77: #{tpu_custom_call.1} parent=31 // pred_fallthru
          _
        // Predicated region
        $region115: #{tpu_custom_call.1} parent=31 // pred_check
          %p441 = pneg %p104
        $region116: #{tpu_custom_call.1} parent=31 // pred_check_branch
          %443 = sbr.rel (%p441) target = $region118
        $region117: #{tpu_custom_call.1} parent=31 // pred_region
          %s444 = sand.u32 %s94, 1
          %s445 = sand.u32 %s94, 1
          %s446 = smul.addr %s445, 64
          %s447 = scalar_lea.vmem [#allocation8], %s446
          %s448 = smul.u32 8, %s21
          %s449 = smul.addr %s448, 3
          %s450 = sadd.s32 %s22, %s449
          %s451 = smul.addr %s450, 8
          %s452 = scalar_lea.vmem %s2, %s451
          // Predicated region
          $region119: #{tpu_custom_call.1} parent=117 // pred_check
            _
          $region120: #{tpu_custom_call.1} parent=117 // pred_check_branch
            %454 = sbr.rel (0) target = $region122
          $region121: #{tpu_custom_call.1} parent=117 // pred_region
            // Predicated region
            $region123: #{tpu_custom_call.1} parent=121 // pred_check
              _
            $region124: #{tpu_custom_call.1} parent=121 // pred_check_branch
              %456 = sbr.rel (0) target = $region126
            $region125: #{tpu_custom_call.1} parent=121 // pred_region
              // Predicated region
              $region138: #{tpu_custom_call.1} parent=125 // pred_check
                _
              $region139: #{tpu_custom_call.1} parent=125 // pred_check_branch
                %486 = sbr.rel (0) target = $region141
              $region140: #{tpu_custom_call.1} parent=125 // pred_region
                loop: start=0, step=1, limit=1
                $region142: #{tpu_custom_call.1} parent=140 // loop_pre_header
                  _
                $region143: #{tpu_custom_call.1} parent=140 // loop_header
                  %s488 = sphi 0, %s492
                  %p489 = scmp.ge.s32.totalorder %s488, 1
                  %s493 = sphi %s452, %s452
                  %s494 = sphi %s447, %s447
                $region144: #{tpu_custom_call.1} parent=140 // loop_header_branch
                  %491 = sbr.rel (%p489) target = $region148
                $region145: #{tpu_custom_call.1} parent=140 // loop_body
                  %v495 = vld [vmem:[%s493] sm:$0xff]
                  %496 = vst [vmem:[%s494] sm:$0xff] %v495
                  %v497 = vld [vmem:[%s493 + $0x18] sm:$0xff]
                  %498 = vst [vmem:[%s494 + $0x8] sm:$0xff] %v497
                  %v499 = vld [vmem:[%s493 + $0x30] sm:$0xff]
                  %500 = vst [vmem:[%s494 + $0x10] sm:$0xff] %v499
                  %v501 = vld [vmem:[%s493 + $0x48] sm:$0xff]
                  %502 = vst [vmem:[%s494 + $0x18] sm:$0xff] %v501
                  %v503 = vld [vmem:[%s493 + $0x60] sm:$0xff]
                  %504 = vst [vmem:[%s494 + $0x20] sm:$0xff] %v503
                  %v505 = vld [vmem:[%s493 + $0x78] sm:$0xff]
                  %506 = vst [vmem:[%s494 + $0x28] sm:$0xff] %v505
                  %v507 = vld [vmem:[%s493 + $0x90] sm:$0xff]
                  %508 = vst [vmem:[%s494 + $0x30] sm:$0xff] %v507
                  %v509 = vld [vmem:[%s493 + $0xa8] sm:$0xff]
                  %510 = vst [vmem:[%s494 + $0x38] sm:$0xff] %v509
                $region146: #{tpu_custom_call.1} parent=140 // loop_footer
                  %s492 = sadd.s32 1, %s488
                $region147: #{tpu_custom_call.1} parent=140 // loop_footer_branch
                  %487 = sbr.rel target = $region143
                $region148: #{tpu_custom_call.1} parent=140 // loop_exit
                  _
              $region141: #{tpu_custom_call.1} parent=125 // pred_fallthru
                _
              // Predicated region
              $region149: #{tpu_custom_call.1} parent=125 // pred_check
                _
              $region150: #{tpu_custom_call.1} parent=125 // pred_check_branch
                %512 = sbr.rel target = $region152
              $region151: #{tpu_custom_call.1} parent=125 // pred_region
                _
              $region152: #{tpu_custom_call.1} parent=125 // pred_fallthru
                _
            $region126: #{tpu_custom_call.1} parent=121 // pred_fallthru
              _
            // Predicated region
            $region127: #{tpu_custom_call.1} parent=121 // pred_check
              _
            $region128: #{tpu_custom_call.1} parent=121 // pred_check_branch
              %458 = sbr.rel target = $region130
            $region129: #{tpu_custom_call.1} parent=121 // pred_region
              %s460 = ssub.s32 256, 1
              loop: start=0, step=1, limit=1
              $region131: #{tpu_custom_call.1} parent=129 // loop_pre_header
                _
              $region132: #{tpu_custom_call.1} parent=129 // loop_header
                %s462 = sphi 0, %s466
                %p463 = scmp.ge.s32.totalorder %s462, 1
                %s467 = sphi %s452, %s452
                %s468 = sphi %s447, %s447
              $region133: #{tpu_custom_call.1} parent=129 // loop_header_branch
                %465 = sbr.rel (%p463) target = $region137
              $region134: #{tpu_custom_call.1} parent=129 // loop_body
                %v469 = vld [vmem:[%s467] sm:%s460]
                %470 = vst [vmem:[%s468] sm:%s460] %v469
                %v471 = vld [vmem:[%s467 + $0x18] sm:%s460]
                %472 = vst [vmem:[%s468 + $0x8] sm:%s460] %v471
                %v473 = vld [vmem:[%s467 + $0x30] sm:%s460]
                %474 = vst [vmem:[%s468 + $0x10] sm:%s460] %v473
                %v475 = vld [vmem:[%s467 + $0x48] sm:%s460]
                %476 = vst [vmem:[%s468 + $0x18] sm:%s460] %v475
                %v477 = vld [vmem:[%s467 + $0x60] sm:%s460]
                %478 = vst [vmem:[%s468 + $0x20] sm:%s460] %v477
                %v479 = vld [vmem:[%s467 + $0x78] sm:%s460]
                %480 = vst [vmem:[%s468 + $0x28] sm:%s460] %v479
                %v481 = vld [vmem:[%s467 + $0x90] sm:%s460]
                %482 = vst [vmem:[%s468 + $0x30] sm:%s460] %v481
                %v483 = vld [vmem:[%s467 + $0xa8] sm:%s460]
                %484 = vst [vmem:[%s468 + $0x38] sm:%s460] %v483
              $region135: #{tpu_custom_call.1} parent=129 // loop_footer
                %s466 = sadd.s32 1, %s462
              $region136: #{tpu_custom_call.1} parent=129 // loop_footer_branch
                %461 = sbr.rel target = $region132
              $region137: #{tpu_custom_call.1} parent=129 // loop_exit
                _
            $region130: #{tpu_custom_call.1} parent=121 // pred_fallthru
              _
          $region122: #{tpu_custom_call.1} parent=117 // pred_fallthru
            _
          %513 = vnop
        $region118: #{tpu_custom_call.1} parent=31 // pred_fallthru
          _
        // Predicated region
        $region153: #{tpu_custom_call.1} parent=31 // pred_check
          %p514 = pneg %p132
        $region154: #{tpu_custom_call.1} parent=31 // pred_check_branch
          %516 = sbr.rel (%p514) target = $region156
        $region155: #{tpu_custom_call.1} parent=31 // pred_region
          %s517 = sand.u32 %s122, 1
          %s518 = sand.u32 %s122, 1
          %s519 = smul.addr %s518, 64
          %s520 = scalar_lea.vmem [#allocation9], %s519
          %s521 = smul.u32 8, %s21
          %s522 = smul.addr %s521, 3
          %s523 = sadd.s32 %s22, %s522
          %s524 = smul.addr %s523, 8
          %s525 = scalar_lea.vmem %s3, %s524
          // Predicated region
          $region157: #{tpu_custom_call.1} parent=155 // pred_check
            _
          $region158: #{tpu_custom_call.1} parent=155 // pred_check_branch
            %527 = sbr.rel (0) target = $region160
          $region159: #{tpu_custom_call.1} parent=155 // pred_region
            // Predicated region
            $region161: #{tpu_custom_call.1} parent=159 // pred_check
              _
            $region162: #{tpu_custom_call.1} parent=159 // pred_check_branch
              %529 = sbr.rel (0) target = $region164
            $region163: #{tpu_custom_call.1} parent=159 // pred_region
              // Predicated region
              $region176: #{tpu_custom_call.1} parent=163 // pred_check
                _
              $region177: #{tpu_custom_call.1} parent=163 // pred_check_branch
                %559 = sbr.rel (0) target = $region179
              $region178: #{tpu_custom_call.1} parent=163 // pred_region
                loop: start=0, step=1, limit=1
                $region180: #{tpu_custom_call.1} parent=178 // loop_pre_header
                  _
                $region181: #{tpu_custom_call.1} parent=178 // loop_header
                  %s561 = sphi 0, %s565
                  %p562 = scmp.ge.s32.totalorder %s561, 1
                  %s566 = sphi %s525, %s525
                  %s567 = sphi %s520, %s520
                $region182: #{tpu_custom_call.1} parent=178 // loop_header_branch
                  %564 = sbr.rel (%p562) target = $region186
                $region183: #{tpu_custom_call.1} parent=178 // loop_body
                  %v568 = vld [vmem:[%s566] sm:$0xff]
                  %569 = vst [vmem:[%s567] sm:$0xff] %v568
                  %v570 = vld [vmem:[%s566 + $0x18] sm:$0xff]
                  %571 = vst [vmem:[%s567 + $0x8] sm:$0xff] %v570
                  %v572 = vld [vmem:[%s566 + $0x30] sm:$0xff]
                  %573 = vst [vmem:[%s567 + $0x10] sm:$0xff] %v572
                  %v574 = vld [vmem:[%s566 + $0x48] sm:$0xff]
                  %575 = vst [vmem:[%s567 + $0x18] sm:$0xff] %v574
                  %v576 = vld [vmem:[%s566 + $0x60] sm:$0xff]
                  %577 = vst [vmem:[%s567 + $0x20] sm:$0xff] %v576
                  %v578 = vld [vmem:[%s566 + $0x78] sm:$0xff]
                  %579 = vst [vmem:[%s567 + $0x28] sm:$0xff] %v578
                  %v580 = vld [vmem:[%s566 + $0x90] sm:$0xff]
                  %581 = vst [vmem:[%s567 + $0x30] sm:$0xff] %v580
                  %v582 = vld [vmem:[%s566 + $0xa8] sm:$0xff]
                  %583 = vst [vmem:[%s567 + $0x38] sm:$0xff] %v582
                $region184: #{tpu_custom_call.1} parent=178 // loop_footer
                  %s565 = sadd.s32 1, %s561
                $region185: #{tpu_custom_call.1} parent=178 // loop_footer_branch
                  %560 = sbr.rel target = $region181
                $region186: #{tpu_custom_call.1} parent=178 // loop_exit
                  _
              $region179: #{tpu_custom_call.1} parent=163 // pred_fallthru
                _
              // Predicated region
              $region187: #{tpu_custom_call.1} parent=163 // pred_check
                _
              $region188: #{tpu_custom_call.1} parent=163 // pred_check_branch
                %585 = sbr.rel target = $region190
              $region189: #{tpu_custom_call.1} parent=163 // pred_region
                _
              $region190: #{tpu_custom_call.1} parent=163 // pred_fallthru
                _
            $region164: #{tpu_custom_call.1} parent=159 // pred_fallthru
              _
            // Predicated region
            $region165: #{tpu_custom_call.1} parent=159 // pred_check
              _
            $region166: #{tpu_custom_call.1} parent=159 // pred_check_branch
              %531 = sbr.rel target = $region168
            $region167: #{tpu_custom_call.1} parent=159 // pred_region
              %s533 = ssub.s32 256, 1
              loop: start=0, step=1, limit=1
              $region169: #{tpu_custom_call.1} parent=167 // loop_pre_header
                _
              $region170: #{tpu_custom_call.1} parent=167 // loop_header
                %s535 = sphi 0, %s539
                %p536 = scmp.ge.s32.totalorder %s535, 1
                %s540 = sphi %s525, %s525
                %s541 = sphi %s520, %s520
              $region171: #{tpu_custom_call.1} parent=167 // loop_header_branch
                %538 = sbr.rel (%p536) target = $region175
              $region172: #{tpu_custom_call.1} parent=167 // loop_body
                %v542 = vld [vmem:[%s540] sm:%s533]
                %543 = vst [vmem:[%s541] sm:%s533] %v542
                %v544 = vld [vmem:[%s540 + $0x18] sm:%s533]
                %545 = vst [vmem:[%s541 + $0x8] sm:%s533] %v544
                %v546 = vld [vmem:[%s540 + $0x30] sm:%s533]
                %547 = vst [vmem:[%s541 + $0x10] sm:%s533] %v546
                %v548 = vld [vmem:[%s540 + $0x48] sm:%s533]
                %549 = vst [vmem:[%s541 + $0x18] sm:%s533] %v548
                %v550 = vld [vmem:[%s540 + $0x60] sm:%s533]
                %551 = vst [vmem:[%s541 + $0x20] sm:%s533] %v550
                %v552 = vld [vmem:[%s540 + $0x78] sm:%s533]
                %553 = vst [vmem:[%s541 + $0x28] sm:%s533] %v552
                %v554 = vld [vmem:[%s540 + $0x90] sm:%s533]
                %555 = vst [vmem:[%s541 + $0x30] sm:%s533] %v554
                %v556 = vld [vmem:[%s540 + $0xa8] sm:%s533]
                %557 = vst [vmem:[%s541 + $0x38] sm:%s533] %v556
              $region173: #{tpu_custom_call.1} parent=167 // loop_footer
                %s539 = sadd.s32 1, %s535
              $region174: #{tpu_custom_call.1} parent=167 // loop_footer_branch
                %534 = sbr.rel target = $region170
              $region175: #{tpu_custom_call.1} parent=167 // loop_exit
                _
            $region168: #{tpu_custom_call.1} parent=159 // pred_fallthru
              _
          $region160: #{tpu_custom_call.1} parent=155 // pred_fallthru
            _
          %586 = vnop
        $region156: #{tpu_custom_call.1} parent=31 // pred_fallthru
          _
      $region32: #{tpu_custom_call.1} parent=5 // pred_fallthru
        _
      %p587 = scmp.le.s32.totalorder 1, %s14
      %p588 = scmp.lt.s32.totalorder %s14, 4
      %p589 = pnand %p587, %p588
      %p590 = pneg %p589
      // Predicated region
      $region191: #{tpu_custom_call.1} parent=5 // pred_check
        _
      $region192: #{tpu_custom_call.1} parent=5 // pred_check_branch
        %592 = sbr.rel (%p589) target = $region194
      $region193: #{tpu_custom_call.1} parent=5 // pred_region
        %s593 = ssub.s32 %s14, 1
        %s594 = sand.u32 %s41, 1
        %s595 = sand.u32 %s41, 1
        %s596 = smul.addr %s595, 32
        %s597 = scalar_lea.vmem [#allocation6], %s596
        // Predicated region
        $region195: #{tpu_custom_call.1} parent=193 // pred_check
          %p598 = pneg %p54
        $region196: #{tpu_custom_call.1} parent=193 // pred_check_branch
          %600 = sbr.rel (%p598) target = $region198
        $region197: #{tpu_custom_call.1} parent=193 // pred_region
          _
        $region198: #{tpu_custom_call.1} parent=193 // pred_fallthru
          _
        %s601 = sand.u32 %s69, 1
        %s602 = sand.u32 %s69, 1
        %s603 = smul.addr %s602, 32
        %s604 = scalar_lea.vmem [#allocation7], %s603
        // Predicated region
        $region199: #{tpu_custom_call.1} parent=193 // pred_check
          %p605 = pneg %p82
        $region200: #{tpu_custom_call.1} parent=193 // pred_check_branch
          %607 = sbr.rel (%p605) target = $region202
        $region201: #{tpu_custom_call.1} parent=193 // pred_region
          _
        $region202: #{tpu_custom_call.1} parent=193 // pred_fallthru
          _
        %s608 = sand.u32 %s97, 1
        %s609 = sand.u32 %s97, 1
        %s610 = smul.addr %s609, 64
        %s611 = scalar_lea.vmem [#allocation8], %s610
        // Predicated region
        $region203: #{tpu_custom_call.1} parent=193 // pred_check
          %p612 = pneg %p110
        $region204: #{tpu_custom_call.1} parent=193 // pred_check_branch
          %614 = sbr.rel (%p612) target = $region206
        $region205: #{tpu_custom_call.1} parent=193 // pred_region
          _
        $region206: #{tpu_custom_call.1} parent=193 // pred_fallthru
          _
        %s615 = sand.u32 %s125, 1
        %s616 = sand.u32 %s125, 1
        %s617 = smul.addr %s616, 64
        %s618 = scalar_lea.vmem [#allocation9], %s617
        // Predicated region
        $region207: #{tpu_custom_call.1} parent=193 // pred_check
          %p619 = pneg %p138
        $region208: #{tpu_custom_call.1} parent=193 // pred_check_branch
          %621 = sbr.rel (%p619) target = $region210
        $region209: #{tpu_custom_call.1} parent=193 // pred_region
          _
        $region210: #{tpu_custom_call.1} parent=193 // pred_fallthru
          _
        %s622 = sand.u32 %s41, 1
        %s623 = sand.u32 %s41, 1
        %s624 = smul.addr %s623, 32
        %s625 = scalar_lea.vmem [#allocation6], %s624
        %p626 = pneg %p54
        %p627 = pneg %p51
        %s628 = sand.u32 %s69, 1
        %s629 = sand.u32 %s69, 1
        %s630 = smul.addr %s629, 32
        %s631 = scalar_lea.vmem [#allocation7], %s630
        %p632 = pneg %p82
        %p633 = pneg %p79
        %s634 = sand.u32 %s97, 1
        %s635 = sand.u32 %s97, 1
        %s636 = smul.addr %s635, 64
        %s637 = scalar_lea.vmem [#allocation8], %s636
        %p638 = pneg %p110
        %p639 = pneg %p107
        %s640 = sand.u32 %s125, 1
        %s641 = sand.u32 %s125, 1
        %s642 = smul.addr %s641, 64
        %s643 = scalar_lea.vmem [#allocation9], %s642
        %p644 = pneg %p138
        %p645 = pneg %p135
        %p646 = pneg %p159
        %p647 = pneg %p156
        %p648 = pneg %p180
        %p649 = pneg %p177
        %p650 = pneg %p201
        %p651 = pneg %p198
        %p652 = pneg %p222
        %p653 = pneg %p219
        %p654 = pneg %p248
        %p655 = pneg %p245
        %p656 = scmp.lt.s32.totalorder %s23, 0
        %s657 = scalar_select %p656, %s23, 0
        %s658 = smul.addr %s657, 8
        %s659 = scalar_lea.vmem %s8, %s658
        %s660 = smul.u32 8, %s23
        %s661 = smul.u32 8, %s23
        %s662 = smul.u32 8, %s23
        %s663 = smul.u32 8, %s23
        %p664 = scmp.lt.s32.totalorder %s23, 0
        %s665 = scalar_select %p664, %s23, 0
        %s666 = smul.addr %s665, 8
        %s667 = scalar_lea.vmem %s8, %s666
        %p668 = scmp.eq.s32.totalorder %s24, 0
        // Predicated region
        $region211: #{tpu_custom_call.1} parent=193 // pred_check
          %p669 = pneg %p668
        $region212: #{tpu_custom_call.1} parent=193 // pred_check_branch
          %671 = sbr.rel (%p669) target = $region214
        $region213: #{tpu_custom_call.1} parent=193 // pred_region
          %vm672 = vcmask 261120
          %673 = vst.msk [vmem:[#allocation2] sm:$0xff] %vm672, 0.0
          %674 = vst.msk [vmem:[#allocation3] sm:$0xff] %vm672, 0.0
          %vm675 = vcmask 7168
          %676 = vst.msk [vmem:[#allocation4] sm:$0xff] %vm675, 0.0
          %677 = vst.msk [vmem:[#allocation5] sm:$0xff] %vm675, 0.0
        $region214: #{tpu_custom_call.1} parent=193 // pred_fallthru
          _
        %v678 = vld [vmem:[%s597] sm:$0xf]
        %v679 = vld [vmem:[%s597 + $0x4] sm:$0xf]
        %v680 = vld [vmem:[%s597 + $0x8] sm:$0xf]
        %v681 = vld [vmem:[%s597 + $0xc] sm:$0xf]
        %v682 = vld [vmem:[%s597 + $0x10] sm:$0xf]
        %v683 = vld [vmem:[%s597 + $0x14] sm:$0xf]
        %v684 = vld [vmem:[%s597 + $0x18] sm:$0xf]
        %v685 = vld [vmem:[%s597 + $0x1c] sm:$0xf]
        %v686 = vunpack.c.l.bf16 %v678
        %v687 = vunpack.c.l.bf16 %v679
        %v688 = vunpack.c.l.bf16 %v680
        %v689 = vunpack.c.l.bf16 %v681
        %v690 = vunpack.c.l.bf16 %v682
        %v691 = vunpack.c.l.bf16 %v683
        %v692 = vunpack.c.l.bf16 %v684
        %v693 = vunpack.c.l.bf16 %v685
        %v694 = vld [vmem:[%s604] sm:$0xf]
        %v695 = vld [vmem:[%s604 + $0x4] sm:$0xf]
        %v696 = vld [vmem:[%s604 + $0x8] sm:$0xf]
        %v697 = vld [vmem:[%s604 + $0xc] sm:$0xf]
        %v698 = vld [vmem:[%s604 + $0x10] sm:$0xf]
        %v699 = vld [vmem:[%s604 + $0x14] sm:$0xf]
        %v700 = vld [vmem:[%s604 + $0x18] sm:$0xf]
        %v701 = vld [vmem:[%s604 + $0x1c] sm:$0xf]
        %v702 = vunpack.c.l.bf16 %v694
        %v703 = vunpack.c.l.bf16 %v695
        %v704 = vunpack.c.l.bf16 %v696
        %v705 = vunpack.c.l.bf16 %v697
        %v706 = vunpack.c.l.bf16 %v698
        %v707 = vunpack.c.l.bf16 %v699
        %v708 = vunpack.c.l.bf16 %v700
        %v709 = vunpack.c.l.bf16 %v701
        %v710 = vld [vmem:[%s611] sm:$0xff]
        %v711 = vld [vmem:[%s611 + $0x8] sm:$0xff]
        %v712 = vld [vmem:[%s611 + $0x10] sm:$0xff]
        %v713 = vld [vmem:[%s611 + $0x18] sm:$0xff]
        %v714 = vld [vmem:[%s611 + $0x20] sm:$0xff]
        %v715 = vld [vmem:[%s611 + $0x28] sm:$0xff]
        %v716 = vld [vmem:[%s611 + $0x30] sm:$0xff]
        %v717 = vld [vmem:[%s611 + $0x38] sm:$0xff]
        %v718 = vld [vmem:[%s618] sm:$0xff]
        %v719 = vld [vmem:[%s618 + $0x8] sm:$0xff]
        %v720 = vld [vmem:[%s618 + $0x10] sm:$0xff]
        %v721 = vld [vmem:[%s618 + $0x18] sm:$0xff]
        %v722 = vld [vmem:[%s618 + $0x20] sm:$0xff]
        %v723 = vld [vmem:[%s618 + $0x28] sm:$0xff]
        %v724 = vld [vmem:[%s618 + $0x30] sm:$0xff]
        %v725 = vld [vmem:[%s618 + $0x38] sm:$0xff]
        %v726 = vld [vmem:[#allocation2] sm:$0xff]
        %728 = vset.pattern.permute.xlu0 0
        %729 = vperm.xlu0 %728, %v710
        %v730 = vpop.permute.xlu0 %729
        %733 = vset.pattern.permute.xlu0 0
        %734 = vperm.xlu0 %733, %v711
        %v735 = vpop.permute.xlu0 %734
        %738 = vset.pattern.permute.xlu0 0
        %739 = vperm.xlu0 %738, %v712
        %v740 = vpop.permute.xlu0 %739
        %743 = vset.pattern.permute.xlu0 0
        %744 = vperm.xlu0 %743, %v713
        %v745 = vpop.permute.xlu0 %744
        %748 = vset.pattern.permute.xlu0 0
        %749 = vperm.xlu0 %748, %v714
        %v750 = vpop.permute.xlu0 %749
        %753 = vset.pattern.permute.xlu0 0
        %754 = vperm.xlu0 %753, %v715
        %v755 = vpop.permute.xlu0 %754
        %758 = vset.pattern.permute.xlu0 0
        %759 = vperm.xlu0 %758, %v716
        %v760 = vpop.permute.xlu0 %759
        %763 = vset.pattern.permute.xlu0 0
        %764 = vperm.xlu0 %763, %v717
        %v765 = vpop.permute.xlu0 %764
        %v767 = vmul.f32 %v686, %v730
        %v768 = vmul.f32 %v687, %v735
        %v769 = vmul.f32 %v688, %v740
        %v770 = vmul.f32 %v689, %v745
        %v771 = vmul.f32 %v690, %v750
        %v772 = vmul.f32 %v691, %v755
        %v773 = vmul.f32 %v692, %v760
        %v774 = vmul.f32 %v693, %v765
        %vm775 = vcmask 261120
        %v776 = vsel %vm775, %v767, 0.0
        %v777 = vrot.slane %v776, 4
        %v778 = vadd.f32 %v776, %v777
        %v779 = vrot.slane %v778, 2
        %v780 = vadd.f32 %v778, %v779
        %v781 = vrot.slane %v780, 1
        %v782 = vadd.f32 %v780, %v781
        %v783 = vsel %vm775, %v768, 0.0
        %v784 = vrot.slane %v783, 4
        %v785 = vadd.f32 %v783, %v784
        %v786 = vrot.slane %v785, 2
        %v787 = vadd.f32 %v785, %v786
        %v788 = vrot.slane %v787, 1
        %v789 = vadd.f32 %v787, %v788
        %v790 = vsel %vm775, %v769, 0.0
        %v791 = vrot.slane %v790, 4
        %v792 = vadd.f32 %v790, %v791
        %v793 = vrot.slane %v792, 2
        %v794 = vadd.f32 %v792, %v793
        %v795 = vrot.slane %v794, 1
        %v796 = vadd.f32 %v794, %v795
        %v797 = vsel %vm775, %v770, 0.0
        %v798 = vrot.slane %v797, 4
        %v799 = vadd.f32 %v797, %v798
        %v800 = vrot.slane %v799, 2
        %v801 = vadd.f32 %v799, %v800
        %v802 = vrot.slane %v801, 1
        %v803 = vadd.f32 %v801, %v802
        %v804 = vsel %vm775, %v771, 0.0
        %v805 = vrot.slane %v804, 4
        %v806 = vadd.f32 %v804, %v805
        %v807 = vrot.slane %v806, 2
        %v808 = vadd.f32 %v806, %v807
        %v809 = vrot.slane %v808, 1
        %v810 = vadd.f32 %v808, %v809
        %v811 = vsel %vm775, %v772, 0.0
        %v812 = vrot.slane %v811, 4
        %v813 = vadd.f32 %v811, %v812
        %v814 = vrot.slane %v813, 2
        %v815 = vadd.f32 %v813, %v814
        %v816 = vrot.slane %v815, 1
        %v817 = vadd.f32 %v815, %v816
        %v818 = vsel %vm775, %v773, 0.0
        %v819 = vrot.slane %v818, 4
        %v820 = vadd.f32 %v818, %v819
        %v821 = vrot.slane %v820, 2
        %v822 = vadd.f32 %v820, %v821
        %v823 = vrot.slane %v822, 1
        %v824 = vadd.f32 %v822, %v823
        %v825 = vsel %vm775, %v774, 0.0
        %v826 = vrot.slane %v825, 4
        %v827 = vadd.f32 %v825, %v826
        %v828 = vrot.slane %v827, 2
        %v829 = vadd.f32 %v827, %v828
        %v830 = vrot.slane %v829, 1
        %v831 = vadd.f32 %v829, %v830
        %vm840 = vcmask 1041409
        %v841 = vsel %vm840, %v789, %v782
        %vm842 = vcmask 1042434
        %v843 = vsel %vm842, %v796, %v841
        %vm844 = vcmask 1043459
        %v845 = vsel %vm844, %v803, %v843
        %vm846 = vcmask 1044484
        %v847 = vsel %vm846, %v810, %v845
        %vm848 = vcmask 1045509
        %v849 = vsel %vm848, %v817, %v847
        %vm850 = vcmask 1046534
        %v851 = vsel %vm850, %v824, %v849
        %vm852 = vcmask 1047559
        %v853 = vsel %vm852, %v831, %v851
        %v855 = vadd.f32 %v726, %v853
        %856 = vst.msk [vmem:[#allocation2] sm:$0xff] %vm775, %v855
        %v857 = vld [vmem:[#allocation3] sm:$0xff]
        %859 = vset.pattern.permute.xlu0 0
        %860 = vperm.xlu0 %859, %v718
        %v861 = vpop.permute.xlu0 %860
        %864 = vset.pattern.permute.xlu0 0
        %865 = vperm.xlu0 %864, %v719
        %v866 = vpop.permute.xlu0 %865
        %869 = vset.pattern.permute.xlu0 0
        %870 = vperm.xlu0 %869, %v720
        %v871 = vpop.permute.xlu0 %870
        %874 = vset.pattern.permute.xlu0 0
        %875 = vperm.xlu0 %874, %v721
        %v876 = vpop.permute.xlu0 %875
        %879 = vset.pattern.permute.xlu0 0
        %880 = vperm.xlu0 %879, %v722
        %v881 = vpop.permute.xlu0 %880
        %884 = vset.pattern.permute.xlu0 0
        %885 = vperm.xlu0 %884, %v723
        %v886 = vpop.permute.xlu0 %885
        %889 = vset.pattern.permute.xlu0 0
        %890 = vperm.xlu0 %889, %v724
        %v891 = vpop.permute.xlu0 %890
        %894 = vset.pattern.permute.xlu0 0
        %895 = vperm.xlu0 %894, %v725
        %v896 = vpop.permute.xlu0 %895
        %v898 = vmul.f32 %v702, %v861
        %v899 = vmul.f32 %v703, %v866
        %v900 = vmul.f32 %v704, %v871
        %v901 = vmul.f32 %v705, %v876
        %v902 = vmul.f32 %v706, %v881
        %v903 = vmul.f32 %v707, %v886
        %v904 = vmul.f32 %v708, %v891
        %v905 = vmul.f32 %v709, %v896
        %v906 = vsel %vm775, %v898, 0.0
        %v907 = vrot.slane %v906, 4
        %v908 = vadd.f32 %v906, %v907
        %v909 = vrot.slane %v908, 2
        %v910 = vadd.f32 %v908, %v909
        %v911 = vrot.slane %v910, 1
        %v912 = vadd.f32 %v910, %v911
        %v913 = vsel %vm775, %v899, 0.0
        %v914 = vrot.slane %v913, 4
        %v915 = vadd.f32 %v913, %v914
        %v916 = vrot.slane %v915, 2
        %v917 = vadd.f32 %v915, %v916
        %v918 = vrot.slane %v917, 1
        %v919 = vadd.f32 %v917, %v918
        %v920 = vsel %vm775, %v900, 0.0
        %v921 = vrot.slane %v920, 4
        %v922 = vadd.f32 %v920, %v921
        %v923 = vrot.slane %v922, 2
        %v924 = vadd.f32 %v922, %v923
        %v925 = vrot.slane %v924, 1
        %v926 = vadd.f32 %v924, %v925
        %v927 = vsel %vm775, %v901, 0.0
        %v928 = vrot.slane %v927, 4
        %v929 = vadd.f32 %v927, %v928
        %v930 = vrot.slane %v929, 2
        %v931 = vadd.f32 %v929, %v930
        %v932 = vrot.slane %v931, 1
        %v933 = vadd.f32 %v931, %v932
        %v934 = vsel %vm775, %v902, 0.0
        %v935 = vrot.slane %v934, 4
        %v936 = vadd.f32 %v934, %v935
        %v937 = vrot.slane %v936, 2
        %v938 = vadd.f32 %v936, %v937
        %v939 = vrot.slane %v938, 1
        %v940 = vadd.f32 %v938, %v939
        %v941 = vsel %vm775, %v903, 0.0
        %v942 = vrot.slane %v941, 4
        %v943 = vadd.f32 %v941, %v942
        %v944 = vrot.slane %v943, 2
        %v945 = vadd.f32 %v943, %v944
        %v946 = vrot.slane %v945, 1
        %v947 = vadd.f32 %v945, %v946
        %v948 = vsel %vm775, %v904, 0.0
        %v949 = vrot.slane %v948, 4
        %v950 = vadd.f32 %v948, %v949
        %v951 = vrot.slane %v950, 2
        %v952 = vadd.f32 %v950, %v951
        %v953 = vrot.slane %v952, 1
        %v954 = vadd.f32 %v952, %v953
        %v955 = vsel %vm775, %v905, 0.0
        %v956 = vrot.slane %v955, 4
        %v957 = vadd.f32 %v955, %v956
        %v958 = vrot.slane %v957, 2
        %v959 = vadd.f32 %v957, %v958
        %v960 = vrot.slane %v959, 1
        %v961 = vadd.f32 %v959, %v960
        %v970 = vsel %vm840, %v919, %v912
        %v971 = vsel %vm842, %v926, %v970
        %v972 = vsel %vm844, %v933, %v971
        %v973 = vsel %vm846, %v940, %v972
        %v974 = vsel %vm848, %v947, %v973
        %v975 = vsel %vm850, %v954, %v974
        %v976 = vsel %vm852, %v961, %v975
        %v978 = vadd.f32 %v857, %v976
        %979 = vst.msk [vmem:[#allocation3] sm:$0xff] %vm775, %v978
        %v980 = vld [vmem:[#allocation4] sm:$0xff]
        %vm981 = vcmask 7168
        %v982 = vsel %vm981, %v710, 0.0
        %v983 = vrot.slane %v982, 4
        %v984 = vadd.f32 %v982, %v983
        %v985 = vrot.slane %v984, 2
        %v986 = vadd.f32 %v984, %v985
        %v987 = vrot.slane %v986, 1
        %v988 = vadd.f32 %v986, %v987
        %v989 = vsel %vm981, %v711, 0.0
        %v990 = vrot.slane %v989, 4
        %v991 = vadd.f32 %v989, %v990
        %v992 = vrot.slane %v991, 2
        %v993 = vadd.f32 %v991, %v992
        %v994 = vrot.slane %v993, 1
        %v995 = vadd.f32 %v993, %v994
        %v996 = vsel %vm981, %v712, 0.0
        %v997 = vrot.slane %v996, 4
        %v998 = vadd.f32 %v996, %v997
        %v999 = vrot.slane %v998, 2
        %v1000 = vadd.f32 %v998, %v999
        %v1001 = vrot.slane %v1000, 1
        %v1002 = vadd.f32 %v1000, %v1001
        %v1003 = vsel %vm981, %v713, 0.0
        %v1004 = vrot.slane %v1003, 4
        %v1005 = vadd.f32 %v1003, %v1004
        %v1006 = vrot.slane %v1005, 2
        %v1007 = vadd.f32 %v1005, %v1006
        %v1008 = vrot.slane %v1007, 1
        %v1009 = vadd.f32 %v1007, %v1008
        %v1010 = vsel %vm981, %v714, 0.0
        %v1011 = vrot.slane %v1010, 4
        %v1012 = vadd.f32 %v1010, %v1011
        %v1013 = vrot.slane %v1012, 2
        %v1014 = vadd.f32 %v1012, %v1013
        %v1015 = vrot.slane %v1014, 1
        %v1016 = vadd.f32 %v1014, %v1015
        %v1017 = vsel %vm981, %v715, 0.0
        %v1018 = vrot.slane %v1017, 4
        %v1019 = vadd.f32 %v1017, %v1018
        %v1020 = vrot.slane %v1019, 2
        %v1021 = vadd.f32 %v1019, %v1020
        %v1022 = vrot.slane %v1021, 1
        %v1023 = vadd.f32 %v1021, %v1022
        %v1024 = vsel %vm981, %v716, 0.0
        %v1025 = vrot.slane %v1024, 4
        %v1026 = vadd.f32 %v1024, %v1025
        %v1027 = vrot.slane %v1026, 2
        %v1028 = vadd.f32 %v1026, %v1027
        %v1029 = vrot.slane %v1028, 1
        %v1030 = vadd.f32 %v1028, %v1029
        %v1031 = vsel %vm981, %v717, 0.0
        %v1032 = vrot.slane %v1031, 4
        %v1033 = vadd.f32 %v1031, %v1032
        %v1034 = vrot.slane %v1033, 2
        %v1035 = vadd.f32 %v1033, %v1034
        %v1036 = vrot.slane %v1035, 1
        %v1037 = vadd.f32 %v1035, %v1036
        %v1046 = vsel %vm840, %v995, %v988
        %v1047 = vsel %vm842, %v1002, %v1046
        %v1048 = vsel %vm844, %v1009, %v1047
        %v1049 = vsel %vm846, %v1016, %v1048
        %v1050 = vsel %vm848, %v1023, %v1049
        %v1051 = vsel %vm850, %v1030, %v1050
        %v1052 = vsel %vm852, %v1037, %v1051
        %v1054 = vadd.f32 %v980, %v1052
        %1055 = vst.msk [vmem:[#allocation4] sm:$0xff] %vm981, %v1054
        %v1056 = vld [vmem:[#allocation5] sm:$0xff]
        %v1057 = vsel %vm981, %v718, 0.0
        %v1058 = vrot.slane %v1057, 4
        %v1059 = vadd.f32 %v1057, %v1058
        %v1060 = vrot.slane %v1059, 2
        %v1061 = vadd.f32 %v1059, %v1060
        %v1062 = vrot.slane %v1061, 1
        %v1063 = vadd.f32 %v1061, %v1062
        %v1064 = vsel %vm981, %v719, 0.0
        %v1065 = vrot.slane %v1064, 4
        %v1066 = vadd.f32 %v1064, %v1065
        %v1067 = vrot.slane %v1066, 2
        %v1068 = vadd.f32 %v1066, %v1067
        %v1069 = vrot.slane %v1068, 1
        %v1070 = vadd.f32 %v1068, %v1069
        %v1071 = vsel %vm981, %v720, 0.0
        %v1072 = vrot.slane %v1071, 4
        %v1073 = vadd.f32 %v1071, %v1072
        %v1074 = vrot.slane %v1073, 2
        %v1075 = vadd.f32 %v1073, %v1074
        %v1076 = vrot.slane %v1075, 1
        %v1077 = vadd.f32 %v1075, %v1076
        %v1078 = vsel %vm981, %v721, 0.0
        %v1079 = vrot.slane %v1078, 4
        %v1080 = vadd.f32 %v1078, %v1079
        %v1081 = vrot.slane %v1080, 2
        %v1082 = vadd.f32 %v1080, %v1081
        %v1083 = vrot.slane %v1082, 1
        %v1084 = vadd.f32 %v1082, %v1083
        %v1085 = vsel %vm981, %v722, 0.0
        %v1086 = vrot.slane %v1085, 4
        %v1087 = vadd.f32 %v1085, %v1086
        %v1088 = vrot.slane %v1087, 2
        %v1089 = vadd.f32 %v1087, %v1088
        %v1090 = vrot.slane %v1089, 1
        %v1091 = vadd.f32 %v1089, %v1090
        %v1092 = vsel %vm981, %v723, 0.0
        %v1093 = vrot.slane %v1092, 4
        %v1094 = vadd.f32 %v1092, %v1093
        %v1095 = vrot.slane %v1094, 2
        %v1096 = vadd.f32 %v1094, %v1095
        %v1097 = vrot.slane %v1096, 1
        %v1098 = vadd.f32 %v1096, %v1097
        %v1099 = vsel %vm981, %v724, 0.0
        %v1100 = vrot.slane %v1099, 4
        %v1101 = vadd.f32 %v1099, %v1100
        %v1102 = vrot.slane %v1101, 2
        %v1103 = vadd.f32 %v1101, %v1102
        %v1104 = vrot.slane %v1103, 1
        %v1105 = vadd.f32 %v1103, %v1104
        %v1106 = vsel %vm981, %v725, 0.0
        %v1107 = vrot.slane %v1106, 4
        %v1108 = vadd.f32 %v1106, %v1107
        %v1109 = vrot.slane %v1108, 2
        %v1110 = vadd.f32 %v1108, %v1109
        %v1111 = vrot.slane %v1110, 1
        %v1112 = vadd.f32 %v1110, %v1111
        %v1121 = vsel %vm840, %v1070, %v1063
        %v1122 = vsel %vm842, %v1077, %v1121
        %v1123 = vsel %vm844, %v1084, %v1122
        %v1124 = vsel %vm846, %v1091, %v1123
        %v1125 = vsel %vm848, %v1098, %v1124
        %v1126 = vsel %vm850, %v1105, %v1125
        %v1127 = vsel %vm852, %v1112, %v1126
        %v1129 = vadd.f32 %v1056, %v1127
        %1130 = vst.msk [vmem:[#allocation5] sm:$0xff] %vm981, %v1129
        %p1131 = scmp.eq.s32.totalorder %s24, 2
        // Predicated region
        $region215: #{tpu_custom_call.1} parent=193 // pred_check
          %p1132 = pneg %p1131
        $region216: #{tpu_custom_call.1} parent=193 // pred_check_branch
          %1134 = sbr.rel (%p1132) target = $region218
        $region217: #{tpu_custom_call.1} parent=193 // pred_region
          %v1135 = vld [vmem:[#allocation4] sm:$0xff]
          %v1136 = vmax.f32 %v1135, 1e-09
          %v1137 = vrcp.pop %v1136
          %v1138 = vld [vmem:[#allocation5] sm:$0xff]
          %v1139 = vmax.f32 %v1138, 1e-09
          %v1140 = vrcp.pop %v1139
          %v1141 = vld [vmem:[#allocation2] sm:$0xff]
          %1143 = vset.pattern.permute.xlu0 0
          %1144 = vperm.xlu0 %1143, %v1137
          %v1145 = vpop.permute.xlu0 %1144
          %v1147 = vmul.f32 %v1141, %v1145
          %v1148 = vld [vmem:[#allocation3] sm:$0xff]
          %1150 = vset.pattern.permute.xlu0 0
          %1151 = vperm.xlu0 %1150, %v1140
          %v1152 = vpop.permute.xlu0 %1151
          %v1154 = vmul.f32 %v1148, %v1152
          %v1155 = vsub.f32 %v1147, %v1154
          %v1156 = vand.u32 2147483647, %v1155
          %v1157 = vmul.f32 %v1147, %v1154
          %1159 = vrot.lane.b32.xlu0 %v1154, 32
          %v1160 = vpop.permute.xlu0 %1159
          %1163 = vrot.lane.b32.xlu0 %v1156, 64
          %v1164 = vpop.permute.xlu0 %1163
          %1167 = vrot.lane.b32.xlu0 %v1157, 96
          %v1168 = vpop.permute.xlu0 %1167
          %v1170 = vsel %vm775, %v1147, %v1160
          %vm1171 = vcmask 523264
          %v1172 = vsel %vm1171, %v1170, %v1164
          %vm1173 = vcmask 785408
          %v1174 = vsel %vm1173, %v1172, %v1168
          %v1175 = vld [vmem:[%s4] sm:$0xff]
          %v1176 = vld [vmem:[%s4 + $0x8] sm:$0xff]
          %v1177 = vld [vmem:[%s4 + $0x10] sm:$0xff]
          %v1178 = vld [vmem:[%s4 + $0x18] sm:$0xff]
          %v1179 = vld [vmem:[%s4 + $0x20] sm:$0xff]
          %v1180 = vld [vmem:[%s4 + $0x28] sm:$0xff]
          %v1181 = vld [vmem:[%s4 + $0x30] sm:$0xff]
          %v1182 = vld [vmem:[%s4 + $0x38] sm:$0xff]
          %v1183 = vld [vmem:[%s4 + $0x40] sm:$0xff]
          %v1184 = vld [vmem:[%s4 + $0x48] sm:$0xff]
          %v1185 = vld [vmem:[%s4 + $0x50] sm:$0xff]
          %v1186 = vld [vmem:[%s4 + $0x58] sm:$0xff]
          %v1187 = vld [vmem:[%s4 + $0x60] sm:$0xff]
          %v1188 = vld [vmem:[%s4 + $0x68] sm:$0xff]
          %v1189 = vld [vmem:[%s4 + $0x70] sm:$0xff]
          %v1190 = vld [vmem:[%s4 + $0x78] sm:$0xff]
          %v1191 = vld [vmem:[%s5] sm:$0x1]
          %v1193 = vlaneseq
          %v1194 = vshrl.u32 %v1193, 7
          %v1195 = vsub.s32 0, %v1194
          %v1196 = vrot.slane %v1191, %v1195
          %1198 = vmatprep.subr.mxu0 0.0
          %1199 = vmatpush1.msra.mxu0 %v1190
          %1200 = vmatprep.subr.mxu0 0.0
          %1201 = vmatpush1.msra.mxu0 %v1189
          %1202 = vmatprep.subr.mxu0 0.0
          %1203 = vmatpush1.msra.mxu0 %v1188
          %1204 = vmatprep.subr.mxu0 0.0
          %1205 = vmatpush1.msra.mxu0 %v1187
          %1206 = vmatprep.subr.mxu0 0.0
          %1207 = vmatpush1.msra.mxu0 %v1186
          %1208 = vmatprep.subr.mxu0 0.0
          %1209 = vmatpush1.msra.mxu0 %v1185
          %1210 = vmatprep.subr.mxu0 0.0
          %1211 = vmatpush1.msra.mxu0 %v1184
          %1212 = vmatprep.subr.mxu0 0.0
          %1213 = vmatpush1.msra.mxu0 %v1183
          %1214 = vmatprep.subr.mxu0 0.0
          %1215 = vmatpush1.msra.mxu0 %v1182
          %1216 = vmatprep.subr.mxu0 0.0
          %1217 = vmatpush1.msra.mxu0 %v1181
          %1218 = vmatprep.subr.mxu0 0.0
          %1219 = vmatpush1.msra.mxu0 %v1180
          %1220 = vmatprep.subr.mxu0 0.0
          %1221 = vmatpush1.msra.mxu0 %v1179
          %1222 = vmatprep.subr.mxu0 0.0
          %1223 = vmatpush1.msra.mxu0 %v1178
          %1224 = vmatprep.subr.mxu0 0.0
          %1225 = vmatpush1.msra.mxu0 %v1177
          %1226 = vmatprep.subr.mxu0 0.0
          %1227 = vmatpush1.msra.mxu0 %v1176
          %1228 = vmatprep.subr.mxu0 0.0
          %1229 = vmatpush1.msra.mxu0 %v1175
          %1230 = vmatprep.subr.mxu0 0.0
          %1231 = vmatpush2.msra.mxu0 0.0
          %1232 = vmatprep.subr.mxu0 0.0
          %1233 = vmatpush2.msra.mxu0 0.0
          %1234 = vmatprep.subr.mxu0 0.0
          %1235 = vmatpush2.msra.mxu0 0.0
          %1236 = vmatprep.subr.mxu0 0.0
          %1237 = vmatpush2.msra.mxu0 0.0
          %1238 = vmatprep.subr.mxu0 0.0
          %1239 = vmatpush2.msra.mxu0 0.0
          %1240 = vmatprep.subr.mxu0 0.0
          %1241 = vmatpush2.msra.mxu0 0.0
          %1242 = vmatprep.subr.mxu0 0.0
          %1243 = vmatpush2.msra.mxu0 0.0
          %1244 = vmatprep.subr.mxu0 0.0
          %1245 = vmatpush2.msra.mxu0 0.0
          %1246 = vmatprep.subr.mxu0 0.0
          %1247 = vmatpush2.msra.mxu0 0.0
          %1248 = vmatprep.subr.mxu0 0.0
          %1249 = vmatpush2.msra.mxu0 0.0
          %1250 = vmatprep.subr.mxu0 0.0
          %1251 = vmatpush2.msra.mxu0 0.0
          %1252 = vmatprep.subr.mxu0 0.0
          %1253 = vmatpush2.msra.mxu0 0.0
          %1254 = vmatprep.subr.mxu0 0.0
          %1255 = vmatpush2.msra.mxu0 0.0
          %1256 = vmatprep.subr.mxu0 0.0
          %1257 = vmatpush2.msra.mxu0 0.0
          %1258 = vmatprep.subr.mxu0 0.0
          %1259 = vmatpush2.msra.mxu0 0.0
          %1260 = vmatprep.subr.mxu0 0.0
          %1261 = vmatpush2.msra.mxu0 0.0
          %1262 = vmatprep.mubr.f32.mxu0 0.0
          %1263 = vmatmul.mubr.f32.gmra.mxu0 %v1174
          %v1264 = vpop.f32.mrf.mxu0
          %v1265 = vadd.f32 %v1196, %v1264
          %v1266 = vpop.f32.mrf.mxu0
          %1267 = vdwg.mxu0
          %v1268 = vtanh.pop %v1265
          %v1269 = vld [vmem:[%s6] sm:$0xff]
          %v1270 = vld [vmem:[%s6 + $0x8] sm:$0xff]
          %v1271 = vld [vmem:[%s6 + $0x10] sm:$0xff]
          %v1272 = vld [vmem:[%s6 + $0x18] sm:$0xff]
          %v1273 = vld [vmem:[%s7] sm:$0x1]
          %v1275 = vlaneseq
          %v1276 = vshrl.u32 %v1275, 7
          %v1277 = vsub.s32 0, %v1276
          %v1278 = vrot.slane %v1273, %v1277
          %v1281 = vsel %vm775, %v1268, 0
          %1283 = vmatprep.subr.mxu0 0.0
          %1284 = vmatpush1.msra.mxu0 0.0
          %1285 = vmatprep.subr.mxu0 0.0
          %1286 = vmatpush1.msra.mxu0 0.0
          %1287 = vmatprep.subr.mxu0 0.0
          %1288 = vmatpush1.msra.mxu0 0.0
          %1289 = vmatprep.subr.mxu0 0.0
          %1290 = vmatpush1.msra.mxu0 0.0
          %1291 = vmatprep.subr.mxu0 0.0
          %1292 = vmatpush1.msra.mxu0 0.0
          %1293 = vmatprep.subr.mxu0 0.0
          %1294 = vmatpush1.msra.mxu0 0.0
          %1295 = vmatprep.subr.mxu0 0.0
          %1296 = vmatpush1.msra.mxu0 0.0
          %1297 = vmatprep.subr.mxu0 0.0
          %1298 = vmatpush1.msra.mxu0 0.0
          %1299 = vmatprep.subr.mxu0 0.0
          %1300 = vmatpush1.msra.mxu0 0.0
          %1301 = vmatprep.subr.mxu0 0.0
          %1302 = vmatpush1.msra.mxu0 0.0
          %1303 = vmatprep.subr.mxu0 0.0
          %1304 = vmatpush1.msra.mxu0 0.0
          %1305 = vmatprep.subr.mxu0 0.0
          %1306 = vmatpush1.msra.mxu0 0.0
          %1307 = vmatprep.subr.mxu0 0.0
          %1308 = vmatpush1.msra.mxu0 %v1272
          %1309 = vmatprep.subr.mxu0 0.0
          %1310 = vmatpush1.msra.mxu0 %v1271
          %1311 = vmatprep.subr.mxu0 0.0
          %1312 = vmatpush1.msra.mxu0 %v1270
          %1313 = vmatprep.subr.mxu0 0.0
          %1314 = vmatpush1.msra.mxu0 %v1269
          %1315 = vmatprep.subr.mxu0 0.0
          %1316 = vmatpush2.msra.mxu0 0.0
          %1317 = vmatprep.subr.mxu0 0.0
          %1318 = vmatpush2.msra.mxu0 0.0
          %1319 = vmatprep.subr.mxu0 0.0
          %1320 = vmatpush2.msra.mxu0 0.0
          %1321 = vmatprep.subr.mxu0 0.0
          %1322 = vmatpush2.msra.mxu0 0.0
          %1323 = vmatprep.subr.mxu0 0.0
          %1324 = vmatpush2.msra.mxu0 0.0
          %1325 = vmatprep.subr.mxu0 0.0
          %1326 = vmatpush2.msra.mxu0 0.0
          %1327 = vmatprep.subr.mxu0 0.0
          %1328 = vmatpush2.msra.mxu0 0.0
          %1329 = vmatprep.subr.mxu0 0.0
          %1330 = vmatpush2.msra.mxu0 0.0
          %1331 = vmatprep.subr.mxu0 0.0
          %1332 = vmatpush2.msra.mxu0 0.0
          %1333 = vmatprep.subr.mxu0 0.0
          %1334 = vmatpush2.msra.mxu0 0.0
          %1335 = vmatprep.subr.mxu0 0.0
          %1336 = vmatpush2.msra.mxu0 0.0
          %1337 = vmatprep.subr.mxu0 0.0
          %1338 = vmatpush2.msra.mxu0 0.0
          %1339 = vmatprep.subr.mxu0 0.0
          %1340 = vmatpush2.msra.mxu0 0.0
          %1341 = vmatprep.subr.mxu0 0.0
          %1342 = vmatpush2.msra.mxu0 0.0
          %1343 = vmatprep.subr.mxu0 0.0
          %1344 = vmatpush2.msra.mxu0 0.0
          %1345 = vmatprep.subr.mxu0 0.0
          %1346 = vmatpush2.msra.mxu0 0.0
          %1347 = vmatprep.mubr.f32.mxu0 0.0
          %1348 = vmatmul.mubr.f32.gmra.mxu0 %v1281
          %v1349 = vpop.f32.mrf.mxu0
          %v1350 = vadd.f32 %v1278, %v1349
          %v1351 = vpop.f32.mrf.mxu0
          %1352 = vdwg.mxu0
          %vm1353 = vcmask 23552
          %1354 = vst.msk [vmem:[%s667] sm:$0xff] %vm1353, %v1350
        $region218: #{tpu_custom_call.1} parent=193 // pred_fallthru
          _
        %p1355 = scmp.lt.s32.totalorder %s23, 0
        %s1356 = scalar_select %p1355, %s23, 0
        %s1357 = smul.addr %s1356, 8
        %s1358 = scalar_lea.vmem %s8, %s1357
        // Predicated region
        $region219: #{tpu_custom_call.1} parent=193 // pred_check
          %p1359 = pneg %p245
        $region220: #{tpu_custom_call.1} parent=193 // pred_check_branch
          %1361 = sbr.rel (%p1359) target = $region222
        $region221: #{tpu_custom_call.1} parent=193 // pred_region
          _
        $region222: #{tpu_custom_call.1} parent=193 // pred_fallthru
          _
        // Predicated region
        $region223: #{tpu_custom_call.1} parent=193 // pred_check
          %p1362 = pneg %p245
        $region224: #{tpu_custom_call.1} parent=193 // pred_check_branch
          %1364 = sbr.rel (%p1362) target = $region226
        $region225: #{tpu_custom_call.1} parent=193 // pred_region
          %p1365 = scmp.lt.s32.totalorder %s23, 0
          %s1366 = scalar_select %p1365, %s23, 0
          %s1367 = smul.addr %s1366, 8
          %s1368 = scalar_lea.vmem %s8, %s1367
        $region226: #{tpu_custom_call.1} parent=193 // pred_fallthru
          _
      $region194: #{tpu_custom_call.1} parent=5 // pred_fallthru
        _
      %p1369 = scmp.le.s32.totalorder 2, %s14
      // Predicated region
      $region227: #{tpu_custom_call.1} parent=5 // pred_check
        %p1370 = pneg %p1369
      $region228: #{tpu_custom_call.1} parent=5 // pred_check_branch
        %1372 = sbr.rel (%p1370) target = $region230
      $region229: #{tpu_custom_call.1} parent=5 // pred_region
        %s1373 = ssub.s32 %s14, 2
      $region230: #{tpu_custom_call.1} parent=5 // pred_fallthru
        _
    $region6: #{tpu_custom_call.1} parent=1 // loop_footer
      %s18 = sadd.s32 1, %s14
    $region7: #{tpu_custom_call.1} parent=1 // loop_footer_branch
      %13 = sbr.rel target = $region3
    $region8: #{tpu_custom_call.1} parent=1 // loop_exit
      _

</llo_original>
